<compile_context>
chip_gen: v5e
topology: v5e:2x2
jax: 0.10.0
libtpu: 0.0.40
codegen_flags: <defaults>
</compile_context>

<pallas_src>
import jax
import jax.numpy as jnp
from jax.experimental import pallas as pl
from jax.experimental.pallas import tpu as pltpu

LANE = 128
TM_MAX_LANES = 8192            # amortization cap on the lane-tile size
VMEM_BUDGET = 8 * 1024 * 1024  # streamed working-set budget (v5e-safe)


def _round_up(n, m):
    return -(-n // m) * m


def _cdiv(a, b):
    return -(-a // b)


def _lane_tile(n_lanes, n_ch, n_batch, n_stream, weight_bytes=0, n_buf=2):
    """Lane-axis (last-dim) tile size.

    Largest multiple of 128 such that:
      * the total grid has >= ~4 steps (>=2 per v7x TensorCore) when possible,
      * n_stream streamed (C_pad, tm) f32 tiles x n_buf pipeline buffers plus
        the (double-buffered) resident weights fit in VMEM_BUDGET,
      * the tile does not exceed TM_MAX_LANES.
    Falls back to the full lane extent (always legal) when that is smaller;
    ragged last tiles are handled by Pallas masking (grid uses cdiv).
    """
    c_pad = _round_up(max(n_ch, 1), 8)          # sublane padding of the C axis
    budget = max(VMEM_BUDGET - n_buf * weight_bytes, 1 << 20)
    tm_vmem = max(LANE, (budget // (n_stream * n_buf * c_pad * 4)) // LANE * LANE)
    min_lane_tiles = max(1, _cdiv(4, max(n_batch, 1)))
    tm_grid = _round_up(_cdiv(n_lanes, min_lane_tiles), LANE)
    tm = min(tm_vmem, tm_grid, TM_MAX_LANES)
    if tm >= n_lanes:
        return n_lanes
    return max(LANE, tm)


def _compiler_params():
    # Explicit scoped-VMEM limit: raises the 16 MiB v5e default, matches the
    # v6e/v7x default, and stays below v7x's 64 MiB physical VMEM.
    return pltpu.CompilerParams(
        dimension_semantics=("parallel", "parallel"),
        vmem_limit_bytes=32 * 1024 * 1024,
    )


# ----------------------------- kernel helpers -------------------------------

def _layernorm_cf(x, gamma, beta, eps=1e-5):
    """LayerNorm over the channel (sublane) axis of a (C, tm) tile."""
    mean = jnp.mean(x, axis=0, keepdims=True)
    var = jnp.mean((x - mean) ** 2, axis=0, keepdims=True)
    return (x - mean) * jax.lax.rsqrt(var + eps) * gamma + beta


def _mm_cf(w, x):
    """(Cout, Cin) @ (Cin, tm) with f32 accumulation, channels-first.

    For tiny channel counts an MXU tile would be almost entirely padding on
    the row/contraction axes, so unroll a VPU multiply-add instead -- note the
    per-k lane extract is on the tiny (C, C) weight, never on the streamed
    lane-dense activation.  Mid-size C feeds the MXU in native bf16 (f32
    accumulation); large C stays f32.
    """
    k_dim = w.shape[1]
    if k_dim <= 16:
        acc = w[:, 0:1] * x[0:1, :]
        for k in range(1, k_dim):
            acc = acc + w[:, k:k + 1] * x[k:k + 1, :]
        return acc
    if k_dim < 256:
        return jnp.dot(w.astype(jnp.bfloat16), x.astype(jnp.bfloat16),
                       preferred_element_type=jnp.float32)
    return jnp.dot(w, x, preferred_element_type=jnp.float32)


# ----------------------------- Pallas kernels -------------------------------

def _ln_proj_kernel(x_ref, gamma_ref, beta_ref, w_ref, fre_ref):
    # fre = proj(LayerNorm(x)); channels on sublanes, spatial on lanes.
    x = x_ref[...].astype(jnp.float32)                       # (C, tm)
    xn = _layernorm_cf(x, gamma_ref[...].astype(jnp.float32),
                       beta_ref[...].astype(jnp.float32))
    fre_ref[...] = _mm_cf(w_ref[...].astype(jnp.float32), xn).astype(fre_ref.dtype)


def _fourier_conv_kernel(re_ref, im_ref, wrr_ref, wri_ref, wir_ref, wii_ref,
                         bre_ref, bim_ref, re_o_ref, im_o_ref):
    # 1x1 conv (2C -> 2C) + SiLU, computed as four (C, C) quadrant matmuls so
    # the [re|im] concat never exists, neither in HBM nor as a VMEM slice
    # crossing an (8,128) tile boundary.
    re = re_ref[...].astype(jnp.float32)
    im = im_ref[...].astype(jnp.float32)
    y_re = (_mm_cf(wrr_ref[...].astype(jnp.float32), re)
            + _mm_cf(wri_ref[...].astype(jnp.float32), im)
            + bre_ref[...].astype(jnp.float32))
    y_im = (_mm_cf(wir_ref[...].astype(jnp.float32), re)
            + _mm_cf(wii_ref[...].astype(jnp.float32), im)
            + bim_ref[...].astype(jnp.float32))
    y_re = y_re * jax.nn.sigmoid(y_re)    # SiLU
    y_im = y_im * jax.nn.sigmoid(y_im)
    re_o_ref[...] = y_re.astype(re_o_ref.dtype)
    im_o_ref[...] = y_im.astype(im_o_ref.dtype)


def _out_fuse_kernel(fu_ref, w_ref, b_ref, x_ref, gamma_ref, beta_ref, o_ref):
    # spa = LayerNorm(x) (recomputed here, never round-tripped through HBM),
    # fre = out_conv(fu), out = fre * spa + x  -- fully fused.
    x = x_ref[...].astype(jnp.float32)
    spa = _layernorm_cf(x, gamma_ref[...].astype(jnp.float32),
                        beta_ref[...].astype(jnp.float32))
    fu = fu_ref[...].astype(jnp.float32)
    fre = (_mm_cf(w_ref[...].astype(jnp.float32), fu)
           + b_ref[...].astype(jnp.float32))
    o_ref[...] = (fre * spa + x).astype(o_ref.dtype)


# ------------------------------- wrappers ------------------------------------
# Default double-buffering is kept (pipeline_mode=pl.Buffered(3) was considered
# but not required at these working-set sizes); cost_estimate hints are added.

def ln_proj(x3, gamma_c1, beta_c1, w_proj, out_dtype):
    """x3: (B, C, L) -> LayerNorm over C + Linear (no bias) -> (B, C, L)."""
    B, C, L = x3.shape
    wbytes = w_proj.size * 4 + 2 * C * 4
    tm = _lane_tile(L, C, B, n_stream=2, weight_bytes=wbytes)
    out_isize = jnp.dtype(out_dtype).itemsize
    cost = pl.CostEstimate(
        flops=int(B * L * (2 * C * C + 10 * C)),
        transcendentals=int(B * L),
        bytes_accessed=int(B * L * C * (x3.dtype.itemsize + out_isize) + wbytes))
    row = lambda b, j: (b, 0, j)
    const = lambda b, j: (0, 0)
    return pl.pallas_call(
        _ln_proj_kernel,
        out_shape=jax.ShapeDtypeStruct((B, C, L), out_dtype),
        grid=(B, pl.cdiv(L, tm)),
        in_specs=[
            pl.BlockSpec((None, C, tm), row),
            pl.BlockSpec((C, 1), const),
            pl.BlockSpec((C, 1), const),
            pl.BlockSpec((C, C), const),
        ],
        out_specs=pl.BlockSpec((None, C, tm), row),
        compiler_params=_compiler_params(),
        cost_estimate=cost,
    )(x3, gamma_c1, beta_c1, w_proj)


def fourier_conv_silu(re3, im3, w_cat, b_cat, out_dtype):
    """(B, C, Lf) real & imag planes -> 1x1 conv(2C->2C) + SiLU -> (re, im)."""
    B, C, Lf = re3.shape
    # Quadrants of the concat-order weight (split on the host side; no fused
    # output is ever sliced across a lane-tile boundary in the kernel).
    wrr, wri = w_cat[:C, :C], w_cat[:C, C:]
    wir, wii = w_cat[C:, :C], w_cat[C:, C:]
    bre, bim = b_cat[:C].reshape(C, 1), b_cat[C:].reshape(C, 1)
    wbytes = w_cat.size * 4 + b_cat.size * 4
    tm = _lane_tile(Lf, C, B, n_stream=4, weight_bytes=wbytes)
    out_isize = jnp.dtype(out_dtype).itemsize
    cost = pl.CostEstimate(
        flops=int(B * Lf * (8 * C * C + 12 * C)),
        transcendentals=int(2 * B * Lf * C),
        bytes_accessed=int(B * Lf * C * (2 * 4 + 2 * out_isize) + wbytes))
    row = lambda b, j: (b, 0, j)
    const = lambda b, j: (0, 0)
    return pl.pallas_call(
        _fourier_conv_kernel,
        out_shape=(jax.ShapeDtypeStruct((B, C, Lf), out_dtype),
                   jax.ShapeDtypeStruct((B, C, Lf), out_dtype)),
        grid=(B, pl.cdiv(Lf, tm)),
        in_specs=[
            pl.BlockSpec((None, C, tm), row),
            pl.BlockSpec((None, C, tm), row),
            pl.BlockSpec((C, C), const),
            pl.BlockSpec((C, C), const),
            pl.BlockSpec((C, C), const),
            pl.BlockSpec((C, C), const),
            pl.BlockSpec((C, 1), const),
            pl.BlockSpec((C, 1), const),
        ],
        out_specs=(pl.BlockSpec((None, C, tm), row),
                   pl.BlockSpec((None, C, tm), row)),
        compiler_params=_compiler_params(),
        cost_estimate=cost,
    )(re3, im3, wrr, wri, wir, wii, bre, bim)


def out_fuse(fu3, w_out, b_out_c1, x3, gamma_c1, beta_c1):
    """out = out_conv(fu) * LayerNorm(x) + x, channels-first (B, C, L)."""
    B, C, L = fu3.shape
    wbytes = w_out.size * 4 + 3 * C * 4
    tm = _lane_tile(L, C, B, n_stream=3, weight_bytes=wbytes)
    cost = pl.CostEstimate(
        flops=int(B * L * (2 * C * C + 14 * C)),
        transcendentals=int(B * L),
        bytes_accessed=int(B * L * C * (fu3.dtype.itemsize
                                        + 2 * x3.dtype.itemsize) + wbytes))
    row = lambda b, j: (b, 0, j)
    const = lambda b, j: (0, 0)
    return pl.pallas_call(
        _out_fuse_kernel,
        out_shape=jax.ShapeDtypeStruct((B, C, L), x3.dtype),
        grid=(B, pl.cdiv(L, tm)),
        in_specs=[
            pl.BlockSpec((None, C, tm), row),
            pl.BlockSpec((C, C), const),
            pl.BlockSpec((C, 1), const),
            pl.BlockSpec((None, C, tm), row),
            pl.BlockSpec((C, 1), const),
            pl.BlockSpec((C, 1), const),
        ],
        out_specs=pl.BlockSpec((None, C, tm), row),
        compiler_params=_compiler_params(),
        cost_estimate=cost,
    )(fu3, w_out, b_out_c1, x3, gamma_c1, beta_c1)


# --------------------------- full forward pass -------------------------------

def spectral_mamba_forward(x, params, intermediate_dtype=jnp.bfloat16):
    """x: (B, C, H, W) float32, NCHW (same interface as the PyTorch module).

    intermediate_dtype: dtype of the HBM-resident intermediates (fre and the
    Fourier-branch re/im planes).  In-kernel compute is always f32; the
    default bfloat16 halves HBM traffic on the kernel->FFT->kernel handoffs.
    Pass jnp.float32 for bit-closer numerics vs the PyTorch reference.
    """
    B, C, H, W = x.shape
    L = H * W

    # Channel-major (NCHW-native) 3-D views: channels on sublanes, spatial on
    # lanes -> lane-dense tiles, zero boundary transposes (reshape only).
    x3 = x.reshape(B, C, L)
    gamma = params["ln_gamma"].reshape(C, 1)
    beta = params["ln_beta"].reshape(C, 1)

    # --- LayerNorm + proj Linear (fused Pallas kernel) -> fre ----------------
    fre3 = ln_proj(x3, gamma, beta, params["w_proj"], intermediate_dtype)

    # TODO(synk): LCPMamba (the `attn` / spa branch) was not provided with the
    # source module; spa is treated as the identity on LayerNorm(x).  The
    # LayerNorm is recomputed inside the final fused kernel, so x_norm is
    # never materialized to HBM.

    # --- FourierUnit ----------------------------------------------------------
    fre4 = fre3.reshape(B, C, H, W).astype(jnp.float32)
    ffted = jnp.fft.rfftn(fre4, s=(H, W), axes=(-2, -1), norm="ortho")
    Wf = ffted.shape[-1]
    Lf = H * Wf

    # Real / imag planes stay separate: no [re|im] concat materialized in HBM.
    re3 = ffted.real.reshape(B, C, Lf)
    im3 = ffted.imag.reshape(B, C, Lf)

    re_o, im_o = fourier_conv_silu(re3, im3, params["w_fu_cat"],
                                   params["b_fu_cat"], intermediate_dtype)
    comp = jax.lax.complex(re_o.reshape(B, C, H, Wf).astype(jnp.float32),
                           im_o.reshape(B, C, H, Wf).astype(jnp.float32))
    fu = jnp.fft.irfftn(comp, s=(H, W), axes=(-2, -1), norm="ortho")  # (B,C,H,W)

    # --- out_conv (1x1) + LayerNorm (spa) + fre*spa + x, fully fused ----------
    out3 = out_fuse(fu.reshape(B, C, L), params["w_out"],
                    params["b_out"].reshape(C, 1), x3, gamma, beta)
    return out3.reshape(B, C, H, W)


# ------------------------------ parameters ------------------------------------

def init_params(channels, key):
    C = channels
    k = jax.random.split(key, 5)
    scale = 0.1
    # Fourier 1x1-conv weight generated in the PyTorch FourierUnit channel
    # order (interleaved: channel 2c -> real(c), 2c+1 -> imag(c)) and converted
    # ONCE here to [reals | imags] concat order (hoisted out of the forward).
    w_fu_int = scale * jax.random.normal(k[1], (2 * C, 2 * C), jnp.float32)
    b_fu_int = scale * jax.random.normal(k[2], (2 * C,), jnp.float32)
    perm = jnp.array([2 * c for c in range(C)] + [2 * c + 1 for c in range(C)])
    return {
        "ln_gamma": jnp.ones((C,), jnp.float32),          # LayerNorm defaults
        "ln_beta": jnp.zeros((C,), jnp.float32),
        "w_proj": scale * jax.random.normal(k[0], (C, C), jnp.float32),  # Linear (out,in), no bias
        "w_fu_cat": w_fu_int[perm][:, perm],              # Conv2d 1x1, concat order
        "b_fu_cat": b_fu_int[perm],
        "w_out": scale * jax.random.normal(k[3], (C, C), jnp.float32),   # Conv2d 1x1 (out,in)
        "b_out": scale * jax.random.normal(k[4], (C,), jnp.float32),
    }


if __name__ == "__main__":
    key = jax.random.PRNGKey(0)
    k_x, k_p = jax.random.split(key)

    B, C, H, W = 2, 4, 16, 16
    x = jax.random.normal(k_x, (B, C, H, W), jnp.float32)
    params = init_params(C, k_p)

    fwd = jax.jit(spectral_mamba_forward)
    out = jax.block_until_ready(fwd(x, params))

    assert out.shape == (B, C, H, W), out.shape
    assert bool(jnp.all(jnp.isfinite(out)))
    print("KERNEL_OK")
</pallas_src>

<mosaic_0001>
module attributes {stable_mosaic.version = 11 : i64} {
  func.func @_ln_proj_kernel(%arg0: i32, %arg1: i32, %arg2: memref<1x4x128xf32, #tpu.memory_space<vmem>>, %arg3: memref<4x1xf32, #tpu.memory_space<vmem>>, %arg4: memref<4x1xf32, #tpu.memory_space<vmem>>, %arg5: memref<4x4xf32, #tpu.memory_space<vmem>>, %arg6: memref<1x4x128xbf16, #tpu.memory_space<vmem>>) attributes {dimension_semantics = [#tpu.dimension_semantics<parallel>, #tpu.dimension_semantics<parallel>], iteration_bounds = array<i64: 2, 2>, scalar_prefetch = 0 : i64, scratch_operands = 0 : i64, tpu.core_type = #tpu.core_type<tc>, window_params = [{transform_indices = @transform_0, window_bounds = array<i64: 1, 4, 128>}, {pipeline_mode = #tpu.pipeline_mode<synchronous>, transform_indices = @transform_1, window_bounds = array<i64: 4, 1>}, {pipeline_mode = #tpu.pipeline_mode<synchronous>, transform_indices = @transform_2, window_bounds = array<i64: 4, 1>}, {pipeline_mode = #tpu.pipeline_mode<synchronous>, transform_indices = @transform_3, window_bounds = array<i64: 4, 4>}, {transform_indices = @transform_4, window_bounds = array<i64: 1, 4, 128>}]} {
    %c0 = arith.constant 0 : index
    %c0_0 = arith.constant 0 : index
    %c0_1 = arith.constant 0 : index
    %0 = vector.load %arg2[%c0, %c0_0, %c0_1] : memref<1x4x128xf32, #tpu.memory_space<vmem>>, vector<1x4x128xf32>
    %1 = vector.shape_cast %0 : vector<1x4x128xf32> to vector<4x128xf32>
    %c0_2 = arith.constant 0 : index
    %c0_3 = arith.constant 0 : index
    %2 = vector.load %arg3[%c0_2, %c0_3] : memref<4x1xf32, #tpu.memory_space<vmem>>, vector<4x1xf32>
    %c0_4 = arith.constant 0 : index
    %c0_5 = arith.constant 0 : index
    %3 = vector.load %arg4[%c0_4, %c0_5] : memref<4x1xf32, #tpu.memory_space<vmem>>, vector<4x1xf32>
    %cst = arith.constant dense<0.000000e+00> : vector<128xf32>
    %4 = vector.multi_reduction <add>, %1, %cst [0] : vector<4x128xf32> to vector<128xf32>
    %5 = vector.shape_cast %4 : vector<128xf32> to vector<1x128xf32>
    %cst_6 = arith.constant 4.000000e+00 : f32
    %6 = vector.broadcast %cst_6 : f32 to vector<1x128xf32>
    %7 = arith.divf %5, %6 : vector<1x128xf32>
    %8 = vector.broadcast %7 : vector<1x128xf32> to vector<4x128xf32>
    %9 = arith.subf %1, %8 : vector<4x128xf32>
    %10 = arith.mulf %9, %9 : vector<4x128xf32>
    %cst_7 = arith.constant dense<0.000000e+00> : vector<128xf32>
    %11 = vector.multi_reduction <add>, %10, %cst_7 [0] : vector<4x128xf32> to vector<128xf32>
    %12 = vector.shape_cast %11 : vector<128xf32> to vector<1x128xf32>
    %cst_8 = arith.constant 4.000000e+00 : f32
    %13 = vector.broadcast %cst_8 : f32 to vector<1x128xf32>
    %14 = arith.divf %12, %13 : vector<1x128xf32>
    %15 = vector.broadcast %7 : vector<1x128xf32> to vector<4x128xf32>
    %16 = arith.subf %1, %15 : vector<4x128xf32>
    %cst_9 = arith.constant 9.99999974E-6 : f32
    %17 = vector.broadcast %cst_9 : f32 to vector<1x128xf32>
    %18 = arith.addf %14, %17 : vector<1x128xf32>
    %19 = math.rsqrt %18 : vector<1x128xf32>
    %20 = vector.broadcast %19 : vector<1x128xf32> to vector<4x128xf32>
    %21 = arith.mulf %16, %20 : vector<4x128xf32>
    %22 = vector.broadcast %2 : vector<4x1xf32> to vector<4x128xf32>
    %23 = arith.mulf %21, %22 : vector<4x128xf32>
    %24 = vector.broadcast %3 : vector<4x1xf32> to vector<4x128xf32>
    %25 = arith.addf %23, %24 : vector<4x128xf32>
    %c0_10 = arith.constant 0 : index
    %c0_11 = arith.constant 0 : index
    %26 = vector.load %arg5[%c0_10, %c0_11] : memref<4x4xf32, #tpu.memory_space<vmem>>, vector<4x4xf32>
    %27 = vector.extract_strided_slice %26 {offsets = [0, 0], sizes = [4, 1], strides = [1, 1]} : vector<4x4xf32> to vector<4x1xf32>
    %28 = vector.extract_strided_slice %25 {offsets = [0, 0], sizes = [1, 128], strides = [1, 1]} : vector<4x128xf32> to vector<1x128xf32>
    %29 = vector.broadcast %27 : vector<4x1xf32> to vector<4x128xf32>
    %30 = vector.broadcast %28 : vector<1x128xf32> to vector<4x128xf32>
    %31 = arith.mulf %29, %30 : vector<4x128xf32>
    %32 = vector.extract_strided_slice %26 {offsets = [0, 1], sizes = [4, 1], strides = [1, 1]} : vector<4x4xf32> to vector<4x1xf32>
    %33 = vector.extract_strided_slice %25 {offsets = [1, 0], sizes = [1, 128], strides = [1, 1]} : vector<4x128xf32> to vector<1x128xf32>
    %34 = vector.broadcast %32 : vector<4x1xf32> to vector<4x128xf32>
    %35 = vector.broadcast %33 : vector<1x128xf32> to vector<4x128xf32>
    %36 = arith.mulf %34, %35 : vector<4x128xf32>
    %37 = arith.addf %31, %36 : vector<4x128xf32>
    %38 = vector.extract_strided_slice %26 {offsets = [0, 2], sizes = [4, 1], strides = [1, 1]} : vector<4x4xf32> to vector<4x1xf32>
    %39 = vector.extract_strided_slice %25 {offsets = [2, 0], sizes = [1, 128], strides = [1, 1]} : vector<4x128xf32> to vector<1x128xf32>
    %40 = vector.broadcast %38 : vector<4x1xf32> to vector<4x128xf32>
    %41 = vector.broadcast %39 : vector<1x128xf32> to vector<4x128xf32>
    %42 = arith.mulf %40, %41 : vector<4x128xf32>
    %43 = arith.addf %37, %42 : vector<4x128xf32>
    %44 = vector.extract_strided_slice %26 {offsets = [0, 3], sizes = [4, 1], strides = [1, 1]} : vector<4x4xf32> to vector<4x1xf32>
    %45 = vector.extract_strided_slice %25 {offsets = [3, 0], sizes = [1, 128], strides = [1, 1]} : vector<4x128xf32> to vector<1x128xf32>
    %46 = vector.broadcast %44 : vector<4x1xf32> to vector<4x128xf32>
    %47 = vector.broadcast %45 : vector<1x128xf32> to vector<4x128xf32>
    %48 = arith.mulf %46, %47 : vector<4x128xf32>
    %49 = arith.addf %43, %48 : vector<4x128xf32>
    %50 = arith.truncf %49 : vector<4x128xf32> to vector<4x128xbf16>
    %c0_12 = arith.constant 0 : index
    %c0_13 = arith.constant 0 : index
    %c0_14 = arith.constant 0 : index
    %51 = vector.load %arg6[%c0_12, %c0_13, %c0_14] : memref<1x4x128xbf16, #tpu.memory_space<vmem>>, vector<1x4x128xbf16>
    %52 = vector.shape_cast %51 : vector<1x4x128xbf16> to vector<4x128xbf16>
    %53 = vector.shape_cast %50 : vector<4x128xbf16> to vector<1x4x128xbf16>
    tpu.vector_store %arg6[%c0_12, %c0_13, %c0_14], %53 {strides = array<i32>} : memref<1x4x128xbf16, #tpu.memory_space<vmem>>, vector<1x4x128xbf16>,
    return
  }
  func.func @transform_0(%arg0: i32, %arg1: i32) -> (i32, i32, i32) {
    %c0_i32 = arith.constant 0 : i32
    %c0_i32_0 = arith.constant 0 : i32
    return %arg0, %c0_i32, %arg1 : i32, i32, i32
  }
  func.func @transform_1(%arg0: i32, %arg1: i32) -> (i32, i32) {
    %c0_i32 = arith.constant 0 : i32
    %c0_i32_0 = arith.constant 0 : i32
    %c0_i32_1 = arith.constant 0 : i32
    return %c0_i32, %c0_i32_0 : i32, i32
  }
  func.func @transform_2(%arg0: i32, %arg1: i32) -> (i32, i32) {
    %c0_i32 = arith.constant 0 : i32
    %c0_i32_0 = arith.constant 0 : i32
    %c0_i32_1 = arith.constant 0 : i32
    return %c0_i32, %c0_i32_0 : i32, i32
  }
  func.func @transform_3(%arg0: i32, %arg1: i32) -> (i32, i32) {
    %c0_i32 = arith.constant 0 : i32
    %c0_i32_0 = arith.constant 0 : i32
    %c0_i32_1 = arith.constant 0 : i32
    return %c0_i32, %c0_i32_0 : i32, i32
  }
  func.func @transform_4(%arg0: i32, %arg1: i32) -> (i32, i32, i32) {
    %c0_i32 = arith.constant 0 : i32
    %c0_i32_0 = arith.constant 0 : i32
    return %arg0, %c0_i32, %arg1 : i32, i32, i32
  }
}

module attributes {stable_mosaic.version = 11 : i64} {
  func.func @_fourier_conv_kernel(%arg0: i32, %arg1: i32, %arg2: memref<1x4x128xf32, #tpu.memory_space<vmem>>, %arg3: memref<1x4x128xf32, #tpu.memory_space<vmem>>, %arg4: memref<4x4xf32, #tpu.memory_space<vmem>>, %arg5: memref<4x4xf32, #tpu.memory_space<vmem>>, %arg6: memref<4x4xf32, #tpu.memory_space<vmem>>, %arg7: memref<4x4xf32, #tpu.memory_space<vmem>>, %arg8: memref<4x1xf32, #tpu.memory_space<vmem>>, %arg9: memref<4x1xf32, #tpu.memory_space<vmem>>, %arg10: memref<1x4x128xbf16, #tpu.memory_space<vmem>>, %arg11: memref<1x4x128xbf16, #tpu.memory_space<vmem>>) attributes {dimension_semantics = [#tpu.dimension_semantics<parallel>, #tpu.dimension_semantics<parallel>], iteration_bounds = array<i64: 2, 2>, scalar_prefetch = 0 : i64, scratch_operands = 0 : i64, tpu.core_type = #tpu.core_type<tc>, window_params = [{transform_indices = @transform_0, window_bounds = array<i64: 1, 4, 128>}, {transform_indices = @transform_1, window_bounds = array<i64: 1, 4, 128>}, {pipeline_mode = #tpu.pipeline_mode<synchronous>, transform_indices = @transform_2, window_bounds = array<i64: 4, 4>}, {pipeline_mode = #tpu.pipeline_mode<synchronous>, transform_indices = @transform_3, window_bounds = array<i64: 4, 4>}, {pipeline_mode = #tpu.pipeline_mode<synchronous>, transform_indices = @transform_4, window_bounds = array<i64: 4, 4>}, {pipeline_mode = #tpu.pipeline_mode<synchronous>, transform_indices = @transform_5, window_bounds = array<i64: 4, 4>}, {pipeline_mode = #tpu.pipeline_mode<synchronous>, transform_indices = @transform_6, window_bounds = array<i64: 4, 1>}, {pipeline_mode = #tpu.pipeline_mode<synchronous>, transform_indices = @transform_7, window_bounds = array<i64: 4, 1>}, {transform_indices = @transform_8, window_bounds = array<i64: 1, 4, 128>}, {transform_indices = @transform_9, window_bounds = array<i64: 1, 4, 128>}]} {
    %c0 = arith.constant 0 : index
    %c0_0 = arith.constant 0 : index
    %c0_1 = arith.constant 0 : index
    %0 = vector.load %arg2[%c0, %c0_0, %c0_1] : memref<1x4x128xf32, #tpu.memory_space<vmem>>, vector<1x4x128xf32>
    %1 = vector.shape_cast %0 : vector<1x4x128xf32> to vector<4x128xf32>
    %c0_2 = arith.constant 0 : index
    %c0_3 = arith.constant 0 : index
    %c0_4 = arith.constant 0 : index
    %2 = vector.load %arg3[%c0_2, %c0_3, %c0_4] : memref<1x4x128xf32, #tpu.memory_space<vmem>>, vector<1x4x128xf32>
    %3 = vector.shape_cast %2 : vector<1x4x128xf32> to vector<4x128xf32>
    %c0_5 = arith.constant 0 : index
    %c0_6 = arith.constant 0 : index
    %4 = vector.load %arg4[%c0_5, %c0_6] : memref<4x4xf32, #tpu.memory_space<vmem>>, vector<4x4xf32>
    %5 = vector.extract_strided_slice %4 {offsets = [0, 0], sizes = [4, 1], strides = [1, 1]} : vector<4x4xf32> to vector<4x1xf32>
    %6 = vector.extract_strided_slice %1 {offsets = [0, 0], sizes = [1, 128], strides = [1, 1]} : vector<4x128xf32> to vector<1x128xf32>
    %7 = vector.broadcast %5 : vector<4x1xf32> to vector<4x128xf32>
    %8 = vector.broadcast %6 : vector<1x128xf32> to vector<4x128xf32>
    %9 = arith.mulf %7, %8 : vector<4x128xf32>
    %10 = vector.extract_strided_slice %4 {offsets = [0, 1], sizes = [4, 1], strides = [1, 1]} : vector<4x4xf32> to vector<4x1xf32>
    %11 = vector.extract_strided_slice %1 {offsets = [1, 0], sizes = [1, 128], strides = [1, 1]} : vector<4x128xf32> to vector<1x128xf32>
    %12 = vector.broadcast %10 : vector<4x1xf32> to vector<4x128xf32>
    %13 = vector.broadcast %11 : vector<1x128xf32> to vector<4x128xf32>
    %14 = arith.mulf %12, %13 : vector<4x128xf32>
    %15 = arith.addf %9, %14 : vector<4x128xf32>
    %16 = vector.extract_strided_slice %4 {offsets = [0, 2], sizes = [4, 1], strides = [1, 1]} : vector<4x4xf32> to vector<4x1xf32>
    %17 = vector.extract_strided_slice %1 {offsets = [2, 0], sizes = [1, 128], strides = [1, 1]} : vector<4x128xf32> to vector<1x128xf32>
    %18 = vector.broadcast %16 : vector<4x1xf32> to vector<4x128xf32>
    %19 = vector.broadcast %17 : vector<1x128xf32> to vector<4x128xf32>
    %20 = arith.mulf %18, %19 : vector<4x128xf32>
    %21 = arith.addf %15, %20 : vector<4x128xf32>
    %22 = vector.extract_strided_slice %4 {offsets = [0, 3], sizes = [4, 1], strides = [1, 1]} : vector<4x4xf32> to vector<4x1xf32>
    %23 = vector.extract_strided_slice %1 {offsets = [3, 0], sizes = [1, 128], strides = [1, 1]} : vector<4x128xf32> to vector<1x128xf32>
    %24 = vector.broadcast %22 : vector<4x1xf32> to vector<4x128xf32>
    %25 = vector.broadcast %23 : vector<1x128xf32> to vector<4x128xf32>
    %26 = arith.mulf %24, %25 : vector<4x128xf32>
    %27 = arith.addf %21, %26 : vector<4x128xf32>
    %c0_7 = arith.constant 0 : index
    %c0_8 = arith.constant 0 : index
    %28 = vector.load %arg5[%c0_7, %c0_8] : memref<4x4xf32, #tpu.memory_space<vmem>>, vector<4x4xf32>
    %29 = vector.extract_strided_slice %28 {offsets = [0, 0], sizes = [4, 1], strides = [1, 1]} : vector<4x4xf32> to vector<4x1xf32>
    %30 = vector.extract_strided_slice %3 {offsets = [0, 0], sizes = [1, 128], strides = [1, 1]} : vector<4x128xf32> to vector<1x128xf32>
    %31 = vector.broadcast %29 : vector<4x1xf32> to vector<4x128xf32>
    %32 = vector.broadcast %30 : vector<1x128xf32> to vector<4x128xf32>
    %33 = arith.mulf %31, %32 : vector<4x128xf32>
    %34 = vector.extract_strided_slice %28 {offsets = [0, 1], sizes = [4, 1], strides = [1, 1]} : vector<4x4xf32> to vector<4x1xf32>
    %35 = vector.extract_strided_slice %3 {offsets = [1, 0], sizes = [1, 128], strides = [1, 1]} : vector<4x128xf32> to vector<1x128xf32>
    %36 = vector.broadcast %34 : vector<4x1xf32> to vector<4x128xf32>
    %37 = vector.broadcast %35 : vector<1x128xf32> to vector<4x128xf32>
    %38 = arith.mulf %36, %37 : vector<4x128xf32>
    %39 = arith.addf %33, %38 : vector<4x128xf32>
    %40 = vector.extract_strided_slice %28 {offsets = [0, 2], sizes = [4, 1], strides = [1, 1]} : vector<4x4xf32> to vector<4x1xf32>
    %41 = vector.extract_strided_slice %3 {offsets = [2, 0], sizes = [1, 128], strides = [1, 1]} : vector<4x128xf32> to vector<1x128xf32>
    %42 = vector.broadcast %40 : vector<4x1xf32> to vector<4x128xf32>
    %43 = vector.broadcast %41 : vector<1x128xf32> to vector<4x128xf32>
    %44 = arith.mulf %42, %43 : vector<4x128xf32>
    %45 = arith.addf %39, %44 : vector<4x128xf32>
    %46 = vector.extract_strided_slice %28 {offsets = [0, 3], sizes = [4, 1], strides = [1, 1]} : vector<4x4xf32> to vector<4x1xf32>
    %47 = vector.extract_strided_slice %3 {offsets = [3, 0], sizes = [1, 128], strides = [1, 1]} : vector<4x128xf32> to vector<1x128xf32>
    %48 = vector.broadcast %46 : vector<4x1xf32> to vector<4x128xf32>
    %49 = vector.broadcast %47 : vector<1x128xf32> to vector<4x128xf32>
    %50 = arith.mulf %48, %49 : vector<4x128xf32>
    %51 = arith.addf %45, %50 : vector<4x128xf32>
    %52 = arith.addf %27, %51 : vector<4x128xf32>
    %c0_9 = arith.constant 0 : index
    %c0_10 = arith.constant 0 : index
    %53 = vector.load %arg8[%c0_9, %c0_10] : memref<4x1xf32, #tpu.memory_space<vmem>>, vector<4x1xf32>
    %54 = vector.broadcast %53 : vector<4x1xf32> to vector<4x128xf32>
    %55 = arith.addf %52, %54 : vector<4x128xf32>
    %c0_11 = arith.constant 0 : index
    %c0_12 = arith.constant 0 : index
    %56 = vector.load %arg6[%c0_11, %c0_12] : memref<4x4xf32, #tpu.memory_space<vmem>>, vector<4x4xf32>
    %57 = vector.extract_strided_slice %56 {offsets = [0, 0], sizes = [4, 1], strides = [1, 1]} : vector<4x4xf32> to vector<4x1xf32>
    %58 = vector.extract_strided_slice %1 {offsets = [0, 0], sizes = [1, 128], strides = [1, 1]} : vector<4x128xf32> to vector<1x128xf32>
    %59 = vector.broadcast %57 : vector<4x1xf32> to vector<4x128xf32>
    %60 = vector.broadcast %58 : vector<1x128xf32> to vector<4x128xf32>
    %61 = arith.mulf %59, %60 : vector<4x128xf32>
    %62 = vector.extract_strided_slice %56 {offsets = [0, 1], sizes = [4, 1], strides = [1, 1]} : vector<4x4xf32> to vector<4x1xf32>
    %63 = vector.extract_strided_slice %1 {offsets = [1, 0], sizes = [1, 128], strides = [1, 1]} : vector<4x128xf32> to vector<1x128xf32>
    %64 = vector.broadcast %62 : vector<4x1xf32> to vector<4x128xf32>
    %65 = vector.broadcast %63 : vector<1x128xf32> to vector<4x128xf32>
    %66 = arith.mulf %64, %65 : vector<4x128xf32>
    %67 = arith.addf %61, %66 : vector<4x128xf32>
    %68 = vector.extract_strided_slice %56 {offsets = [0, 2], sizes = [4, 1], strides = [1, 1]} : vector<4x4xf32> to vector<4x1xf32>
    %69 = vector.extract_strided_slice %1 {offsets = [2, 0], sizes = [1, 128], strides = [1, 1]} : vector<4x128xf32> to vector<1x128xf32>
    %70 = vector.broadcast %68 : vector<4x1xf32> to vector<4x128xf32>
    %71 = vector.broadcast %69 : vector<1x128xf32> to vector<4x128xf32>
    %72 = arith.mulf %70, %71 : vector<4x128xf32>
    %73 = arith.addf %67, %72 : vector<4x128xf32>
    %74 = vector.extract_strided_slice %56 {offsets = [0, 3], sizes = [4, 1], strides = [1, 1]} : vector<4x4xf32> to vector<4x1xf32>
    %75 = vector.extract_strided_slice %1 {offsets = [3, 0], sizes = [1, 128], strides = [1, 1]} : vector<4x128xf32> to vector<1x128xf32>
    %76 = vector.broadcast %74 : vector<4x1xf32> to vector<4x128xf32>
    %77 = vector.broadcast %75 : vector<1x128xf32> to vector<4x128xf32>
    %78 = arith.mulf %76, %77 : vector<4x128xf32>
    %79 = arith.addf %73, %78 : vector<4x128xf32>
    %c0_13 = arith.constant 0 : index
    %c0_14 = arith.constant 0 : index
    %80 = vector.load %arg7[%c0_13, %c0_14] : memref<4x4xf32, #tpu.memory_space<vmem>>, vector<4x4xf32>
    %81 = vector.extract_strided_slice %80 {offsets = [0, 0], sizes = [4, 1], strides = [1, 1]} : vector<4x4xf32> to vector<4x1xf32>
    %82 = vector.extract_strided_slice %3 {offsets = [0, 0], sizes = [1, 128], strides = [1, 1]} : vector<4x128xf32> to vector<1x128xf32>
    %83 = vector.broadcast %81 : vector<4x1xf32> to vector<4x128xf32>
    %84 = vector.broadcast %82 : vector<1x128xf32> to vector<4x128xf32>
    %85 = arith.mulf %83, %84 : vector<4x128xf32>
    %86 = vector.extract_strided_slice %80 {offsets = [0, 1], sizes = [4, 1], strides = [1, 1]} : vector<4x4xf32> to vector<4x1xf32>
    %87 = vector.extract_strided_slice %3 {offsets = [1, 0], sizes = [1, 128], strides = [1, 1]} : vector<4x128xf32> to vector<1x128xf32>
    %88 = vector.broadcast %86 : vector<4x1xf32> to vector<4x128xf32>
    %89 = vector.broadcast %87 : vector<1x128xf32> to vector<4x128xf32>
    %90 = arith.mulf %88, %89 : vector<4x128xf32>
    %91 = arith.addf %85, %90 : vector<4x128xf32>
    %92 = vector.extract_strided_slice %80 {offsets = [0, 2], sizes = [4, 1], strides = [1, 1]} : vector<4x4xf32> to vector<4x1xf32>
    %93 = vector.extract_strided_slice %3 {offsets = [2, 0], sizes = [1, 128], strides = [1, 1]} : vector<4x128xf32> to vector<1x128xf32>
    %94 = vector.broadcast %92 : vector<4x1xf32> to vector<4x128xf32>
    %95 = vector.broadcast %93 : vector<1x128xf32> to vector<4x128xf32>
    %96 = arith.mulf %94, %95 : vector<4x128xf32>
    %97 = arith.addf %91, %96 : vector<4x128xf32>
    %98 = vector.extract_strided_slice %80 {offsets = [0, 3], sizes = [4, 1], strides = [1, 1]} : vector<4x4xf32> to vector<4x1xf32>
    %99 = vector.extract_strided_slice %3 {offsets = [3, 0], sizes = [1, 128], strides = [1, 1]} : vector<4x128xf32> to vector<1x128xf32>
    %100 = vector.broadcast %98 : vector<4x1xf32> to vector<4x128xf32>
    %101 = vector.broadcast %99 : vector<1x128xf32> to vector<4x128xf32>
    %102 = arith.mulf %100, %101 : vector<4x128xf32>
    %103 = arith.addf %97, %102 : vector<4x128xf32>
    %104 = arith.addf %79, %103 : vector<4x128xf32>
    %c0_15 = arith.constant 0 : index
    %c0_16 = arith.constant 0 : index
    %105 = vector.load %arg9[%c0_15, %c0_16] : memref<4x1xf32, #tpu.memory_space<vmem>>, vector<4x1xf32>
    %106 = vector.broadcast %105 : vector<4x1xf32> to vector<4x128xf32>
    %107 = arith.addf %104, %106 : vector<4x128xf32>
    %108 = arith.negf %55 : vector<4x128xf32>
    %109 = math.exp %108 : vector<4x128xf32>
    %cst = arith.constant 1.000000e+00 : f32
    %110 = vector.broadcast %cst : f32 to vector<4x128xf32>
    %111 = arith.addf %110, %109 : vector<4x128xf32>
    %112 = arith.divf %110, %111 : vector<4x128xf32>
    %113 = arith.mulf %55, %112 : vector<4x128xf32>
    %114 = arith.negf %107 : vector<4x128xf32>
    %115 = math.exp %114 : vector<4x128xf32>
    %cst_17 = arith.constant 1.000000e+00 : f32
    %116 = vector.broadcast %cst_17 : f32 to vector<4x128xf32>
    %117 = arith.addf %116, %115 : vector<4x128xf32>
    %118 = arith.divf %116, %117 : vector<4x128xf32>
    %119 = arith.mulf %107, %118 : vector<4x128xf32>
    %120 = arith.truncf %113 : vector<4x128xf32> to vector<4x128xbf16>
    %c0_18 = arith.constant 0 : index
    %c0_19 = arith.constant 0 : index
    %c0_20 = arith.constant 0 : index
    %121 = vector.load %arg10[%c0_18, %c0_19, %c0_20] : memref<1x4x128xbf16, #tpu.memory_space<vmem>>, vector<1x4x128xbf16>
    %122 = vector.shape_cast %121 : vector<1x4x128xbf16> to vector<4x128xbf16>
    %123 = vector.shape_cast %120 : vector<4x128xbf16> to vector<1x4x128xbf16>
    tpu.vector_store %arg10[%c0_18, %c0_19, %c0_20], %123 {strides = array<i32>} : memref<1x4x128xbf16, #tpu.memory_space<vmem>>, vector<1x4x128xbf16>,
    %124 = arith.truncf %119 : vector<4x128xf32> to vector<4x128xbf16>
    %c0_21 = arith.constant 0 : index
    %c0_22 = arith.constant 0 : index
    %c0_23 = arith.constant 0 : index
    %125 = vector.load %arg11[%c0_21, %c0_22, %c0_23] : memref<1x4x128xbf16, #tpu.memory_space<vmem>>, vector<1x4x128xbf16>
    %126 = vector.shape_cast %125 : vector<1x4x128xbf16> to vector<4x128xbf16>
    %127 = vector.shape_cast %124 : vector<4x128xbf16> to vector<1x4x128xbf16>
    tpu.vector_store %arg11[%c0_21, %c0_22, %c0_23], %127 {strides = array<i32>} : memref<1x4x128xbf16, #tpu.memory_space<vmem>>, vector<1x4x128xbf16>,
    return
  }
  func.func @transform_0(%arg0: i32, %arg1: i32) -> (i32, i32, i32) {
    %c0_i32 = arith.constant 0 : i32
    %c0_i32_0 = arith.constant 0 : i32
    return %arg0, %c0_i32, %arg1 : i32, i32, i32
  }
  func.func @transform_1(%arg0: i32, %arg1: i32) -> (i32, i32, i32) {
    %c0_i32 = arith.constant 0 : i32
    %c0_i32_0 = arith.constant 0 : i32
    return %arg0, %c0_i32, %arg1 : i32, i32, i32
  }
  func.func @transform_2(%arg0: i32, %arg1: i32) -> (i32, i32) {
    %c0_i32 = arith.constant 0 : i32
    %c0_i32_0 = arith.constant 0 : i32
    %c0_i32_1 = arith.constant 0 : i32
    return %c0_i32, %c0_i32_0 : i32, i32
  }
  func.func @transform_3(%arg0: i32, %arg1: i32) -> (i32, i32) {
    %c0_i32 = arith.constant 0 : i32
    %c0_i32_0 = arith.constant 0 : i32
    %c0_i32_1 = arith.constant 0 : i32
    return %c0_i32, %c0_i32_0 : i32, i32
  }
  func.func @transform_4(%arg0: i32, %arg1: i32) -> (i32, i32) {
    %c0_i32 = arith.constant 0 : i32
    %c0_i32_0 = arith.constant 0 : i32
    %c0_i32_1 = arith.constant 0 : i32
    return %c0_i32, %c0_i32_0 : i32, i32
  }
  func.func @transform_5(%arg0: i32, %arg1: i32) -> (i32, i32) {
    %c0_i32 = arith.constant 0 : i32
    %c0_i32_0 = arith.constant 0 : i32
    %c0_i32_1 = arith.constant 0 : i32
    return %c0_i32, %c0_i32_0 : i32, i32
  }
  func.func @transform_6(%arg0: i32, %arg1: i32) -> (i32, i32) {
    %c0_i32 = arith.constant 0 : i32
    %c0_i32_0 = arith.constant 0 : i32
    %c0_i32_1 = arith.constant 0 : i32
    return %c0_i32, %c0_i32_0 : i32, i32
  }
  func.func @transform_7(%arg0: i32, %arg1: i32) -> (i32, i32) {
    %c0_i32 = arith.constant 0 : i32
    %c0_i32_0 = arith.constant 0 : i32
    %c0_i32_1 = arith.constant 0 : i32
    return %c0_i32, %c0_i32_0 : i32, i32
  }
  func.func @transform_8(%arg0: i32, %arg1: i32) -> (i32, i32, i32) {
    %c0_i32 = arith.constant 0 : i32
    %c0_i32_0 = arith.constant 0 : i32
    return %arg0, %c0_i32, %arg1 : i32, i32, i32
  }
  func.func @transform_9(%arg0: i32, %arg1: i32) -> (i32, i32, i32) {
    %c0_i32 = arith.constant 0 : i32
    %c0_i32_0 = arith.constant 0 : i32
    return %arg0, %c0_i32, %arg1 : i32, i32, i32
  }
}

module attributes {stable_mosaic.version = 11 : i64} {
  func.func @_out_fuse_kernel(%arg0: i32, %arg1: i32, %arg2: memref<1x4x128xf32, #tpu.memory_space<vmem>>, %arg3: memref<4x4xf32, #tpu.memory_space<vmem>>, %arg4: memref<4x1xf32, #tpu.memory_space<vmem>>, %arg5: memref<1x4x128xf32, #tpu.memory_space<vmem>>, %arg6: memref<4x1xf32, #tpu.memory_space<vmem>>, %arg7: memref<4x1xf32, #tpu.memory_space<vmem>>, %arg8: memref<1x4x128xf32, #tpu.memory_space<vmem>>) attributes {dimension_semantics = [#tpu.dimension_semantics<parallel>, #tpu.dimension_semantics<parallel>], iteration_bounds = array<i64: 2, 2>, scalar_prefetch = 0 : i64, scratch_operands = 0 : i64, tpu.core_type = #tpu.core_type<tc>, window_params = [{transform_indices = @transform_0, window_bounds = array<i64: 1, 4, 128>}, {pipeline_mode = #tpu.pipeline_mode<synchronous>, transform_indices = @transform_1, window_bounds = array<i64: 4, 4>}, {pipeline_mode = #tpu.pipeline_mode<synchronous>, transform_indices = @transform_2, window_bounds = array<i64: 4, 1>}, {transform_indices = @transform_3, window_bounds = array<i64: 1, 4, 128>}, {pipeline_mode = #tpu.pipeline_mode<synchronous>, transform_indices = @transform_4, window_bounds = array<i64: 4, 1>}, {pipeline_mode = #tpu.pipeline_mode<synchronous>, transform_indices = @transform_5, window_bounds = array<i64: 4, 1>}, {transform_indices = @transform_6, window_bounds = array<i64: 1, 4, 128>}]} {
    %c0 = arith.constant 0 : index
    %c0_0 = arith.constant 0 : index
    %c0_1 = arith.constant 0 : index
    %0 = vector.load %arg5[%c0, %c0_0, %c0_1] : memref<1x4x128xf32, #tpu.memory_space<vmem>>, vector<1x4x128xf32>
    %1 = vector.shape_cast %0 : vector<1x4x128xf32> to vector<4x128xf32>
    %c0_2 = arith.constant 0 : index
    %c0_3 = arith.constant 0 : index
    %2 = vector.load %arg6[%c0_2, %c0_3] : memref<4x1xf32, #tpu.memory_space<vmem>>, vector<4x1xf32>
    %c0_4 = arith.constant 0 : index
    %c0_5 = arith.constant 0 : index
    %3 = vector.load %arg7[%c0_4, %c0_5] : memref<4x1xf32, #tpu.memory_space<vmem>>, vector<4x1xf32>
    %cst = arith.constant dense<0.000000e+00> : vector<128xf32>
    %4 = vector.multi_reduction <add>, %1, %cst [0] : vector<4x128xf32> to vector<128xf32>
    %5 = vector.shape_cast %4 : vector<128xf32> to vector<1x128xf32>
    %cst_6 = arith.constant 4.000000e+00 : f32
    %6 = vector.broadcast %cst_6 : f32 to vector<1x128xf32>
    %7 = arith.divf %5, %6 : vector<1x128xf32>
    %8 = vector.broadcast %7 : vector<1x128xf32> to vector<4x128xf32>
    %9 = arith.subf %1, %8 : vector<4x128xf32>
    %10 = arith.mulf %9, %9 : vector<4x128xf32>
    %cst_7 = arith.constant dense<0.000000e+00> : vector<128xf32>
    %11 = vector.multi_reduction <add>, %10, %cst_7 [0] : vector<4x128xf32> to vector<128xf32>
    %12 = vector.shape_cast %11 : vector<128xf32> to vector<1x128xf32>
    %cst_8 = arith.constant 4.000000e+00 : f32
    %13 = vector.broadcast %cst_8 : f32 to vector<1x128xf32>
    %14 = arith.divf %12, %13 : vector<1x128xf32>
    %15 = vector.broadcast %7 : vector<1x128xf32> to vector<4x128xf32>
    %16 = arith.subf %1, %15 : vector<4x128xf32>
    %cst_9 = arith.constant 9.99999974E-6 : f32
    %17 = vector.broadcast %cst_9 : f32 to vector<1x128xf32>
    %18 = arith.addf %14, %17 : vector<1x128xf32>
    %19 = math.rsqrt %18 : vector<1x128xf32>
    %20 = vector.broadcast %19 : vector<1x128xf32> to vector<4x128xf32>
    %21 = arith.mulf %16, %20 : vector<4x128xf32>
    %22 = vector.broadcast %2 : vector<4x1xf32> to vector<4x128xf32>
    %23 = arith.mulf %21, %22 : vector<4x128xf32>
    %24 = vector.broadcast %3 : vector<4x1xf32> to vector<4x128xf32>
    %25 = arith.addf %23, %24 : vector<4x128xf32>
    %c0_10 = arith.constant 0 : index
    %c0_11 = arith.constant 0 : index
    %c0_12 = arith.constant 0 : index
    %26 = vector.load %arg2[%c0_10, %c0_11, %c0_12] : memref<1x4x128xf32, #tpu.memory_space<vmem>>, vector<1x4x128xf32>
    %27 = vector.shape_cast %26 : vector<1x4x128xf32> to vector<4x128xf32>
    %c0_13 = arith.constant 0 : index
    %c0_14 = arith.constant 0 : index
    %28 = vector.load %arg3[%c0_13, %c0_14] : memref<4x4xf32, #tpu.memory_space<vmem>>, vector<4x4xf32>
    %29 = vector.extract_strided_slice %28 {offsets = [0, 0], sizes = [4, 1], strides = [1, 1]} : vector<4x4xf32> to vector<4x1xf32>
    %30 = vector.extract_strided_slice %27 {offsets = [0, 0], sizes = [1, 128], strides = [1, 1]} : vector<4x128xf32> to vector<1x128xf32>
    %31 = vector.broadcast %29 : vector<4x1xf32> to vector<4x128xf32>
    %32 = vector.broadcast %30 : vector<1x128xf32> to vector<4x128xf32>
    %33 = arith.mulf %31, %32 : vector<4x128xf32>
    %34 = vector.extract_strided_slice %28 {offsets = [0, 1], sizes = [4, 1], strides = [1, 1]} : vector<4x4xf32> to vector<4x1xf32>
    %35 = vector.extract_strided_slice %27 {offsets = [1, 0], sizes = [1, 128], strides = [1, 1]} : vector<4x128xf32> to vector<1x128xf32>
    %36 = vector.broadcast %34 : vector<4x1xf32> to vector<4x128xf32>
    %37 = vector.broadcast %35 : vector<1x128xf32> to vector<4x128xf32>
    %38 = arith.mulf %36, %37 : vector<4x128xf32>
    %39 = arith.addf %33, %38 : vector<4x128xf32>
    %40 = vector.extract_strided_slice %28 {offsets = [0, 2], sizes = [4, 1], strides = [1, 1]} : vector<4x4xf32> to vector<4x1xf32>
    %41 = vector.extract_strided_slice %27 {offsets = [2, 0], sizes = [1, 128], strides = [1, 1]} : vector<4x128xf32> to vector<1x128xf32>
    %42 = vector.broadcast %40 : vector<4x1xf32> to vector<4x128xf32>
    %43 = vector.broadcast %41 : vector<1x128xf32> to vector<4x128xf32>
    %44 = arith.mulf %42, %43 : vector<4x128xf32>
    %45 = arith.addf %39, %44 : vector<4x128xf32>
    %46 = vector.extract_strided_slice %28 {offsets = [0, 3], sizes = [4, 1], strides = [1, 1]} : vector<4x4xf32> to vector<4x1xf32>
    %47 = vector.extract_strided_slice %27 {offsets = [3, 0], sizes = [1, 128], strides = [1, 1]} : vector<4x128xf32> to vector<1x128xf32>
    %48 = vector.broadcast %46 : vector<4x1xf32> to vector<4x128xf32>
    %49 = vector.broadcast %47 : vector<1x128xf32> to vector<4x128xf32>
    %50 = arith.mulf %48, %49 : vector<4x128xf32>
    %51 = arith.addf %45, %50 : vector<4x128xf32>
    %c0_15 = arith.constant 0 : index
    %c0_16 = arith.constant 0 : index
    %52 = vector.load %arg4[%c0_15, %c0_16] : memref<4x1xf32, #tpu.memory_space<vmem>>, vector<4x1xf32>
    %53 = vector.broadcast %52 : vector<4x1xf32> to vector<4x128xf32>
    %54 = arith.addf %51, %53 : vector<4x128xf32>
    %55 = arith.mulf %54, %25 : vector<4x128xf32>
    %56 = arith.addf %55, %1 : vector<4x128xf32>
    %c0_17 = arith.constant 0 : index
    %c0_18 = arith.constant 0 : index
    %c0_19 = arith.constant 0 : index
    %57 = vector.load %arg8[%c0_17, %c0_18, %c0_19] : memref<1x4x128xf32, #tpu.memory_space<vmem>>, vector<1x4x128xf32>
    %58 = vector.shape_cast %57 : vector<1x4x128xf32> to vector<4x128xf32>
    %59 = vector.shape_cast %56 : vector<4x128xf32> to vector<1x4x128xf32>
    tpu.vector_store %arg8[%c0_17, %c0_18, %c0_19], %59 {strides = array<i32>} : memref<1x4x128xf32, #tpu.memory_space<vmem>>, vector<1x4x128xf32>,
    return
  }
  func.func @transform_0(%arg0: i32, %arg1: i32) -> (i32, i32, i32) {
    %c0_i32 = arith.constant 0 : i32
    %c0_i32_0 = arith.constant 0 : i32
    return %arg0, %c0_i32, %arg1 : i32, i32, i32
  }
  func.func @transform_1(%arg0: i32, %arg1: i32) -> (i32, i32) {
    %c0_i32 = arith.constant 0 : i32
    %c0_i32_0 = arith.constant 0 : i32
    %c0_i32_1 = arith.constant 0 : i32
    return %c0_i32, %c0_i32_0 : i32, i32
  }
  func.func @transform_2(%arg0: i32, %arg1: i32) -> (i32, i32) {
    %c0_i32 = arith.constant 0 : i32
    %c0_i32_0 = arith.constant 0 : i32
    %c0_i32_1 = arith.constant 0 : i32
    return %c0_i32, %c0_i32_0 : i32, i32
  }
  func.func @transform_3(%arg0: i32, %arg1: i32) -> (i32, i32, i32) {
    %c0_i32 = arith.constant 0 : i32
    %c0_i32_0 = arith.constant 0 : i32
    return %arg0, %c0_i32, %arg1 : i32, i32, i32
  }
  func.func @transform_4(%arg0: i32, %arg1: i32) -> (i32, i32) {
    %c0_i32 = arith.constant 0 : i32
    %c0_i32_0 = arith.constant 0 : i32
    %c0_i32_1 = arith.constant 0 : i32
    return %c0_i32, %c0_i32_0 : i32, i32
  }
  func.func @transform_5(%arg0: i32, %arg1: i32) -> (i32, i32) {
    %c0_i32 = arith.constant 0 : i32
    %c0_i32_0 = arith.constant 0 : i32
    %c0_i32_1 = arith.constant 0 : i32
    return %c0_i32, %c0_i32_0 : i32, i32
  }
  func.func @transform_6(%arg0: i32, %arg1: i32) -> (i32, i32, i32) {
    %c0_i32 = arith.constant 0 : i32
    %c0_i32_0 = arith.constant 0 : i32
    return %arg0, %c0_i32, %arg1 : i32, i32, i32
  }
}

</mosaic_0001>

<llo_original>
// kernel: spectral_mamba_forward.3
$region0: #{spectral_mamba_forward.3}
  #allocation0 [shape = 'u32[]', space=smem, size = 0x4, offset = 0x4, fixed_abs, tag = 'smem constant byte address 0x4 - core index']
  #allocation1 [shape = 'u32[72,128]{1,0:T(1,128)}', space=vmem, size = 0x9000, scoped, tag = 'internal scratch']
  %s0 = inlined_call_operand.vmem [shape: f32[2,4,256], index: 0, kind: input, shape index: {}]
  %s1 = inlined_call_operand.vmem [shape: f32[4,1], index: 1, kind: input, shape index: {}]
  %s2 = inlined_call_operand.vmem [shape: f32[4,1], index: 2, kind: input, shape index: {}]
  %s3 = inlined_call_operand.vmem [shape: f32[4,4], index: 3, kind: input, shape index: {}]
  %s4 = inlined_call_operand.vmem [shape: bf16[2,4,256], index: 4, kind: output, shape index: {}]
  %s5 = sld [smem:[#allocation0]]
  $region49: #{spectral_mamba_forward.3} parent=0
    _
  %s7 = ssub.s32 1, %s5
  %s8 = scalar_select 0, %s7, %s5
  loop: start=0, step=1, limit=6
  $region2: #{spectral_mamba_forward.3} parent=0 // loop_pre_header
    _
  $region3: #{spectral_mamba_forward.3} parent=0 // loop_header
    %s10 = sphi 0, %s14
    %p11 = scmp.ge.s32.totalorder %s10, 6
    %s17 = sphi 0, %s29
    %s18 = sphi 0, %s25
    %s19 = sphi 0, %s17
    %s20 = sphi 0, %s18
    %s21 = sphi 0, %s19
    %s22 = sphi 0, %s20
    %s34 = sphi 0, %s36
    %s37 = sphi 0, %s34
    %s38 = sphi 0, %s37
    %s54 = sphi 0, %s38
    %s58 = sphi 0, %s58
    %s60 = sphi 0, %s58
    %s61 = sphi 0, %s60
    %s75 = sphi 0, %s61
    %s79 = sphi 0, %s79
    %s81 = sphi 0, %s79
    %s82 = sphi 0, %s81
    %s96 = sphi 0, %s82
    %s100 = sphi 0, %s100
    %s102 = sphi 0, %s100
    %s103 = sphi 0, %s102
    %s117 = sphi 0, %s103
    %s125 = sphi 0, %s127
    %s128 = sphi 0, %s125
    %s129 = sphi 0, %s128
    %s145 = sphi 0, %s129
  $region4: #{spectral_mamba_forward.3} parent=0 // loop_header_branch
    %13 = sbr.rel (%p11) target = $region8
  $region5: #{spectral_mamba_forward.3} parent=0 // loop_body
    %s15 = ssub.s32 %s10, 1
    %s16 = ssub.s32 %s10, 2
    %s23 = sadd.s32 1, %s18
    %p24 = scmp.ge.s32.totalorder %s23, 2
    %s25 = scalar_select %p24, 0, %s23
    %s26 = sadd.s32 1, %s17
    %s27 = scalar_select %p24, %s26, %s17
    %p28 = scmp.ge.s32.totalorder %s27, 2
    %s29 = scalar_select %p28, 0, %s27
    %s30 = ssub.s32 %s17, %s29
    %s31 = ssub.s32 %s18, %s25
    %s32 = sor.u32 %s30, %s31
    %p33 = scmp.eq.s32.totalorder %s32, 0
    %s35 = sadd.s32 %s34, 1
    %s36 = scalar_select %p33, %s34, %s35
    %p39 = pneg %p33
    %p40 = scmp.eq.s32.totalorder %s10, 3
    %p41 = por %p39, %p40
    %p42 = scmp.ne.s32.totalorder %s34, %s37
    %p43 = scmp.eq.s32.totalorder %s10, 0
    %p44 = por %p42, %p43
    %p45 = scmp.ne.s32.totalorder %s34, %s37
    %p46 = scmp.eq.s32.totalorder %s15, 3
    %p47 = por %p45, %p46
    %p48 = scmp.ne.s32.totalorder %s37, %s38
    %p49 = scmp.eq.s32.totalorder %s15, 0
    %p50 = por %p48, %p49
    %p51 = scmp.ne.s32.totalorder %s37, %s38
    %p52 = scmp.eq.s32.totalorder %s16, 3
    %p53 = por %p51, %p52
    %p55 = scmp.ne.s32.totalorder %s38, %s54
    %p56 = scmp.eq.s32.totalorder %s16, 0
    %p57 = por %p55, %p56
    %s59 = sadd.s32 %s58, 1
    %p62 = scmp.eq.s32.totalorder %s10, 3
    %p63 = scmp.ne.s32.totalorder %s58, %s60
    %p64 = scmp.eq.s32.totalorder %s10, 0
    %p65 = por %p63, %p64
    %p66 = scmp.ne.s32.totalorder %s58, %s60
    %p67 = scmp.eq.s32.totalorder %s15, 3
    %p68 = por %p66, %p67
    %p69 = scmp.ne.s32.totalorder %s60, %s61
    %p70 = scmp.eq.s32.totalorder %s15, 0
    %p71 = por %p69, %p70
    %p72 = scmp.ne.s32.totalorder %s60, %s61
    %p73 = scmp.eq.s32.totalorder %s16, 3
    %p74 = por %p72, %p73
    %p76 = scmp.ne.s32.totalorder %s61, %s75
    %p77 = scmp.eq.s32.totalorder %s16, 0
    %p78 = por %p76, %p77
    %s80 = sadd.s32 %s79, 1
    %p83 = scmp.eq.s32.totalorder %s10, 3
    %p84 = scmp.ne.s32.totalorder %s79, %s81
    %p85 = scmp.eq.s32.totalorder %s10, 0
    %p86 = por %p84, %p85
    %p87 = scmp.ne.s32.totalorder %s79, %s81
    %p88 = scmp.eq.s32.totalorder %s15, 3
    %p89 = por %p87, %p88
    %p90 = scmp.ne.s32.totalorder %s81, %s82
    %p91 = scmp.eq.s32.totalorder %s15, 0
    %p92 = por %p90, %p91
    %p93 = scmp.ne.s32.totalorder %s81, %s82
    %p94 = scmp.eq.s32.totalorder %s16, 3
    %p95 = por %p93, %p94
    %p97 = scmp.ne.s32.totalorder %s82, %s96
    %p98 = scmp.eq.s32.totalorder %s16, 0
    %p99 = por %p97, %p98
    %s101 = sadd.s32 %s100, 1
    %p104 = scmp.eq.s32.totalorder %s10, 3
    %p105 = scmp.ne.s32.totalorder %s100, %s102
    %p106 = scmp.eq.s32.totalorder %s10, 0
    %p107 = por %p105, %p106
    %p108 = scmp.ne.s32.totalorder %s100, %s102
    %p109 = scmp.eq.s32.totalorder %s15, 3
    %p110 = por %p108, %p109
    %p111 = scmp.ne.s32.totalorder %s102, %s103
    %p112 = scmp.eq.s32.totalorder %s15, 0
    %p113 = por %p111, %p112
    %p114 = scmp.ne.s32.totalorder %s102, %s103
    %p115 = scmp.eq.s32.totalorder %s16, 3
    %p116 = por %p114, %p115
    %p118 = scmp.ne.s32.totalorder %s103, %s117
    %p119 = scmp.eq.s32.totalorder %s16, 0
    %p120 = por %p118, %p119
    %s121 = ssub.s32 %s17, %s29
    %s122 = ssub.s32 %s18, %s25
    %s123 = sor.u32 %s121, %s122
    %p124 = scmp.eq.s32.totalorder %s123, 0
    %s126 = sadd.s32 %s125, 1
    %s127 = scalar_select %p124, %s125, %s126
    %p130 = pneg %p124
    %p131 = scmp.eq.s32.totalorder %s10, 3
    %p132 = por %p130, %p131
    %p133 = scmp.ne.s32.totalorder %s125, %s128
    %p134 = scmp.eq.s32.totalorder %s10, 0
    %p135 = por %p133, %p134
    %p136 = scmp.ne.s32.totalorder %s125, %s128
    %p137 = scmp.eq.s32.totalorder %s15, 3
    %p138 = por %p136, %p137
    %p139 = scmp.ne.s32.totalorder %s128, %s129
    %p140 = scmp.eq.s32.totalorder %s15, 0
    %p141 = por %p139, %p140
    %p142 = scmp.ne.s32.totalorder %s128, %s129
    %p143 = scmp.eq.s32.totalorder %s16, 3
    %p144 = por %p142, %p143
    %p146 = scmp.ne.s32.totalorder %s129, %s145
    %p147 = scmp.eq.s32.totalorder %s16, 0
    %p148 = por %p146, %p147
    %p149 = scmp.le.s32.totalorder 1, %s10
    %p150 = scmp.lt.s32.totalorder %s10, 5
    %p151 = pnand %p149, %p150
    %p152 = pneg %p151
    // Predicated region
    $region9: #{spectral_mamba_forward.3} parent=5 // pred_check
      _
    $region10: #{spectral_mamba_forward.3} parent=5 // pred_check_branch
      %154 = sbr.rel (%p151) target = $region12
    $region11: #{spectral_mamba_forward.3} parent=5 // pred_region
      %s155 = ssub.s32 %s10, 1
      // Predicated region
      $region13: #{spectral_mamba_forward.3} parent=11 // pred_check
        %p156 = pneg %p71
      $region14: #{spectral_mamba_forward.3} parent=11 // pred_check_branch
        %158 = sbr.rel (%p156) target = $region16
      $region15: #{spectral_mamba_forward.3} parent=11 // pred_region
        _
      $region16: #{spectral_mamba_forward.3} parent=11 // pred_fallthru
        _
      // Predicated region
      $region17: #{spectral_mamba_forward.3} parent=11 // pred_check
        %p159 = pneg %p92
      $region18: #{spectral_mamba_forward.3} parent=11 // pred_check_branch
        %161 = sbr.rel (%p159) target = $region20
      $region19: #{spectral_mamba_forward.3} parent=11 // pred_region
        _
      $region20: #{spectral_mamba_forward.3} parent=11 // pred_fallthru
        _
      // Predicated region
      $region21: #{spectral_mamba_forward.3} parent=11 // pred_check
        %p162 = pneg %p113
      $region22: #{spectral_mamba_forward.3} parent=11 // pred_check_branch
        %164 = sbr.rel (%p162) target = $region24
      $region23: #{spectral_mamba_forward.3} parent=11 // pred_region
        _
      $region24: #{spectral_mamba_forward.3} parent=11 // pred_fallthru
        _
    $region12: #{spectral_mamba_forward.3} parent=5 // pred_fallthru
      _
    %p165 = scmp.lt.s32.totalorder %s10, 4
    // Predicated region
    $region25: #{spectral_mamba_forward.3} parent=5 // pred_check
      %p166 = pneg %p165
    $region26: #{spectral_mamba_forward.3} parent=5 // pred_check_branch
      %168 = sbr.rel (%p166) target = $region28
    $region27: #{spectral_mamba_forward.3} parent=5 // pred_region
      // Predicated region
      $region29: #{spectral_mamba_forward.3} parent=27 // pred_check
        %p169 = pneg %p44
      $region30: #{spectral_mamba_forward.3} parent=27 // pred_check_branch
        %171 = sbr.rel (%p169) target = $region32
      $region31: #{spectral_mamba_forward.3} parent=27 // pred_region
        %p172 = scmp.lt.s32.totalorder %s17, 1
        %s173 = scalar_select %p172, %s17, 1
        %p174 = scmp.lt.s32.totalorder %s18, 1
        %s175 = scalar_select %p174, %s18, 1
        %s176 = smul.addr %s173, 2
        %s177 = sadd.s32 %s175, %s176
        %s178 = smul.addr %s177, 4
        %s179 = scalar_lea.vmem %s0, %s178
      $region32: #{spectral_mamba_forward.3} parent=27 // pred_fallthru
        _
    $region28: #{spectral_mamba_forward.3} parent=5 // pred_fallthru
      _
    %p180 = scmp.le.s32.totalorder 1, %s10
    %p181 = scmp.lt.s32.totalorder %s10, 5
    %p182 = pnand %p180, %p181
    %p183 = pneg %p182
    // Predicated region
    $region33: #{spectral_mamba_forward.3} parent=5 // pred_check
      _
    $region34: #{spectral_mamba_forward.3} parent=5 // pred_check_branch
      %185 = sbr.rel (%p182) target = $region36
    $region35: #{spectral_mamba_forward.3} parent=5 // pred_region
      %s186 = ssub.s32 %s10, 1
      %p187 = scmp.lt.s32.totalorder %s19, 1
      %s188 = scalar_select %p187, %s19, 1
      %p189 = scmp.lt.s32.totalorder %s20, 1
      %s190 = scalar_select %p189, %s20, 1
      %s191 = smul.addr %s188, 2
      %s192 = sadd.s32 %s190, %s191
      %s193 = smul.addr %s192, 4
      %s194 = scalar_lea.vmem %s0, %s193
      %p195 = pneg %p50
      %p196 = pneg %p47
      %p197 = pneg %p71
      %p198 = pneg %p68
      %p199 = pneg %p92
      %p200 = pneg %p89
      %p201 = pneg %p113
      %p202 = pneg %p110
      %p203 = pneg %p141
      %p204 = pneg %p138
      %p205 = scmp.lt.s32.totalorder %s19, 1
      %s206 = scalar_select %p205, %s19, 1
      %p207 = scmp.lt.s32.totalorder %s20, 1
      %s208 = scalar_select %p207, %s20, 1
      %s209 = smul.addr %s206, 2
      %s210 = sadd.s32 %s208, %s209
      %s211 = smul.addr %s210, 2
      %s212 = scalar_lea.vmem %s4, %s211
      %p213 = scmp.lt.s32.totalorder %s19, 1
      %s214 = scalar_select %p213, %s19, 1
      %p215 = scmp.lt.s32.totalorder %s20, 1
      %s216 = scalar_select %p215, %s20, 1
      %s217 = smul.addr %s214, 2
      %s218 = sadd.s32 %s216, %s217
      %s219 = smul.addr %s218, 4
      %s220 = scalar_lea.vmem %s0, %s219
      %p221 = scmp.lt.s32.totalorder %s19, 1
      %s222 = scalar_select %p221, %s19, 1
      %p223 = scmp.lt.s32.totalorder %s20, 1
      %s224 = scalar_select %p223, %s20, 1
      %s225 = smul.addr %s222, 2
      %s226 = sadd.s32 %s224, %s225
      %s227 = smul.addr %s226, 2
      %s228 = scalar_lea.vmem %s4, %s227
      %v229 = vld [vmem:[%s220] sm:$0xf]
      %v230 = vld [vmem:[%s1] sm:$0xf]
      %v231 = vld [vmem:[%s2] sm:$0xf]
      %vm232 = vcmask 1043456
      %v233 = vsel %vm232, %v229, 0.0
      %v234 = vrot.slane %v233, 4
      %v235 = vadd.f32 %v233, %v234
      %v236 = vrot.slane %v235, 2
      %v237 = vadd.f32 %v235, %v236
      %v238 = vrot.slane %v237, 1
      %v239 = vadd.f32 %v237, %v238
      %v240 = vrcp.pop 4.0
      %v241 = vmul.f32 4.0, %v240
      %v242 = vsub.f32 1.0, %v241
      %v243 = vmul.f32 %v240, %v242
      %v244 = vadd.f32 %v240, %v243
      %vm245 = vweird.f32 %v240
      %v246 = vsel %vm245, %v240, %v244
      %v247 = vmul.f32 %v239, %v246
      %v248 = vsub.f32 %v229, %v247
      %v249 = vmul.f32 %v248, %v248
      %v250 = vsel %vm232, %v249, 0.0
      %v251 = vrot.slane %v250, 4
      %v252 = vadd.f32 %v250, %v251
      %v253 = vrot.slane %v252, 2
      %v254 = vadd.f32 %v252, %v253
      %v255 = vrot.slane %v254, 1
      %v256 = vadd.f32 %v254, %v255
      %v257 = vmul.f32 %v256, %v246
      %v258 = vadd.f32 %v257, 1e-05
      %v259 = vrsqrt.pop %v258
      %v260 = vmul.f32 %v259, %v258
      %v261 = vmul.f32 %v260, %v259
      %v262 = vmul.f32 0.5, %v261
      %v263 = vsub.f32 1.5, %v262
      %v264 = vmul.f32 %v259, %v263
      %vm265 = vweird.f32 %v258
      %vm266 = vweird.f32 %v259
      %vm267 = vmor %vm265, %vm266
      %v268 = vsel %vm267, %v259, %v264
      %v269 = vmul.f32 %v248, %v268
      %271 = vset.pattern.permute.xlu0 0
      %272 = vperm.xlu0 %271, %v230
      %v273 = vpop.permute.xlu0 %272
      %v275 = vmul.f32 %v269, %v273
      %277 = vset.pattern.permute.xlu0 0
      %278 = vperm.xlu0 %277, %v231
      %v279 = vpop.permute.xlu0 %278
      %v281 = vadd.f32 %v275, %v279
      %v282 = vld [vmem:[%s3] sm:$0xf]
      %284 = vset.pattern.permute.xlu0 0
      %285 = vperm.xlu0 %284, %v282
      %v286 = vpop.permute.xlu0 %285
      %v288 = vperm.slane %v281, 0
      %v289 = vmul.f32 %v286, %v288
      %290 = vset.pattern.permute.xlu0 1
      %291 = vperm.xlu0 %290, %v282
      %v292 = vpop.permute.xlu0 %291
      %v294 = vperm.slane %v281, 1
      %v295 = vmul.f32 %v292, %v294
      %v296 = vadd.f32 %v289, %v295
      %297 = vset.pattern.permute.xlu0 2
      %298 = vperm.xlu0 %297, %v282
      %v299 = vpop.permute.xlu0 %298
      %v301 = vperm.slane %v281, 2
      %v302 = vmul.f32 %v299, %v301
      %v303 = vadd.f32 %v296, %v302
      %304 = vset.pattern.permute.xlu0 3
      %305 = vperm.xlu0 %304, %v282
      %v306 = vpop.permute.xlu0 %305
      %v308 = vperm.slane %v281, 3
      %v309 = vmul.f32 %v306, %v308
      %v310 = vadd.f32 %v303, %v309
      %v311 = vpack.c.bf16 %v310, %v310
      %312 = vst [vmem:[%s228] sm:$0x3] %v311
      %p313 = scmp.lt.s32.totalorder %s19, 1
      %s314 = scalar_select %p313, %s19, 1
      %p315 = scmp.lt.s32.totalorder %s20, 1
      %s316 = scalar_select %p315, %s20, 1
      %s317 = smul.addr %s314, 2
      %s318 = sadd.s32 %s316, %s317
      %s319 = smul.addr %s318, 2
      %s320 = scalar_lea.vmem %s4, %s319
      // Predicated region
      $region37: #{spectral_mamba_forward.3} parent=35 // pred_check
        %p321 = pneg %p138
      $region38: #{spectral_mamba_forward.3} parent=35 // pred_check_branch
        %323 = sbr.rel (%p321) target = $region40
      $region39: #{spectral_mamba_forward.3} parent=35 // pred_region
        _
      $region40: #{spectral_mamba_forward.3} parent=35 // pred_fallthru
        _
    $region36: #{spectral_mamba_forward.3} parent=5 // pred_fallthru
      _
    %p324 = scmp.le.s32.totalorder 2, %s10
    // Predicated region
    $region41: #{spectral_mamba_forward.3} parent=5 // pred_check
      %p325 = pneg %p324
    $region42: #{spectral_mamba_forward.3} parent=5 // pred_check_branch
      %327 = sbr.rel (%p325) target = $region44
    $region43: #{spectral_mamba_forward.3} parent=5 // pred_region
      %s328 = ssub.s32 %s10, 2
      // Predicated region
      $region45: #{spectral_mamba_forward.3} parent=43 // pred_check
        %p329 = pneg %p144
      $region46: #{spectral_mamba_forward.3} parent=43 // pred_check_branch
        %331 = sbr.rel (%p329) target = $region48
      $region47: #{spectral_mamba_forward.3} parent=43 // pred_region
        %p332 = scmp.lt.s32.totalorder %s21, 1
        %s333 = scalar_select %p332, %s21, 1
        %p334 = scmp.lt.s32.totalorder %s22, 1
        %s335 = scalar_select %p334, %s22, 1
        %s336 = smul.addr %s333, 2
        %s337 = sadd.s32 %s335, %s336
        %s338 = smul.addr %s337, 2
        %s339 = scalar_lea.vmem %s4, %s338
      $region48: #{spectral_mamba_forward.3} parent=43 // pred_fallthru
        _
    $region44: #{spectral_mamba_forward.3} parent=5 // pred_fallthru
      _
  $region6: #{spectral_mamba_forward.3} parent=0 // loop_footer
    %s14 = sadd.s32 1, %s10
  $region7: #{spectral_mamba_forward.3} parent=0 // loop_footer_branch
    %9 = sbr.rel target = $region3
  $region8: #{spectral_mamba_forward.3} parent=0 // loop_exit
    _

// kernel: reverse.0
$region0: #{reverse.0}
  %s0 = inlined_call_operand.vmem [shape: f32[2,4,16,7], index: 0, kind: input, shape index: {}]
  %s1 = inlined_call_operand.vmem [shape: f32[2,4,16,7], index: 1, kind: output, shape index: {}]
  $region1: #{reverse.0} parent=0
    #allocation0 [shape = 'u8[65536]{0}', space=vmem, size = 0x10000, scoped, tag = 'operand span for operand 0']
    #allocation1 [shape = 'u8[32768]{0}', space=vmem, size = 0x8000, scoped, tag = 'operand span for operand 1']
    %s2 = scalar_lea.vmem [#allocation0], 8
    // Predicated region
    $region2: #{reverse.0} parent=1 // pred_check
      _
    $region3: #{reverse.0} parent=1 // pred_check_branch
      %4 = sbr.rel (0) target = $region5
    $region4: #{reverse.0} parent=1 // pred_region
      // Predicated region
      $region6: #{reverse.0} parent=4 // pred_check
        _
      $region7: #{reverse.0} parent=4 // pred_check_branch
        %6 = sbr.rel (0) target = $region9
      $region8: #{reverse.0} parent=4 // pred_region
        // Predicated region
        $region21: #{reverse.0} parent=8 // pred_check
          _
        $region22: #{reverse.0} parent=8 // pred_check_branch
          %36 = sbr.rel (0) target = $region24
        $region23: #{reverse.0} parent=8 // pred_region
          loop: start=0, step=1, limit=1
          $region25: #{reverse.0} parent=23 // loop_pre_header
            _
          $region26: #{reverse.0} parent=23 // loop_header
            %s38 = sphi 0, %s42
            %p39 = scmp.ge.s32.totalorder %s38, 1
            %s43 = sphi %s0, %s0
            %s44 = sphi %s2, %s2
          $region27: #{reverse.0} parent=23 // loop_header_branch
            %41 = sbr.rel (%p39) target = $region31
          $region28: #{reverse.0} parent=23 // loop_body
            %v45 = vld [vmem:[%s43] sm:$0xff]
            %46 = vst [vmem:[%s44] sm:$0xff] %v45
            %v47 = vld [vmem:[%s43 + $0x8] sm:$0xff]
            %48 = vst [vmem:[%s44 + $0x10] sm:$0xff] %v47
            %v49 = vld [vmem:[%s43 + $0x10] sm:$0xff]
            %50 = vst [vmem:[%s44 + $0x20] sm:$0xff] %v49
            %v51 = vld [vmem:[%s43 + $0x18] sm:$0xff]
            %52 = vst [vmem:[%s44 + $0x30] sm:$0xff] %v51
            %v53 = vld [vmem:[%s43 + $0x20] sm:$0xff]
            %54 = vst [vmem:[%s44 + $0x40] sm:$0xff] %v53
            %v55 = vld [vmem:[%s43 + $0x28] sm:$0xff]
            %56 = vst [vmem:[%s44 + $0x50] sm:$0xff] %v55
            %v57 = vld [vmem:[%s43 + $0x30] sm:$0xff]
            %58 = vst [vmem:[%s44 + $0x60] sm:$0xff] %v57
            %v59 = vld [vmem:[%s43 + $0x38] sm:$0xff]
            %60 = vst [vmem:[%s44 + $0x70] sm:$0xff] %v59
          $region29: #{reverse.0} parent=23 // loop_footer
            %s42 = sadd.s32 1, %s38
          $region30: #{reverse.0} parent=23 // loop_footer_branch
            %37 = sbr.rel target = $region26
          $region31: #{reverse.0} parent=23 // loop_exit
            _
        $region24: #{reverse.0} parent=8 // pred_fallthru
          _
        // Predicated region
        $region32: #{reverse.0} parent=8 // pred_check
          _
        $region33: #{reverse.0} parent=8 // pred_check_branch
          %62 = sbr.rel target = $region35
        $region34: #{reverse.0} parent=8 // pred_region
          _
        $region35: #{reverse.0} parent=8 // pred_fallthru
          _
      $region9: #{reverse.0} parent=4 // pred_fallthru
        _
      // Predicated region
      $region10: #{reverse.0} parent=4 // pred_check
        _
      $region11: #{reverse.0} parent=4 // pred_check_branch
        %8 = sbr.rel target = $region13
      $region12: #{reverse.0} parent=4 // pred_region
        %s10 = ssub.s32 256, 1
        loop: start=0, step=1, limit=1
        $region14: #{reverse.0} parent=12 // loop_pre_header
          _
        $region15: #{reverse.0} parent=12 // loop_header
          %s12 = sphi 0, %s16
          %p13 = scmp.ge.s32.totalorder %s12, 1
          %s17 = sphi %s0, %s0
          %s18 = sphi %s2, %s2
        $region16: #{reverse.0} parent=12 // loop_header_branch
          %15 = sbr.rel (%p13) target = $region20
        $region17: #{reverse.0} parent=12 // loop_body
          %v19 = vld [vmem:[%s17] sm:%s10]
          %20 = vst [vmem:[%s18] sm:%s10] %v19
          %v21 = vld [vmem:[%s17 + $0x8] sm:%s10]
          %22 = vst [vmem:[%s18 + $0x10] sm:%s10] %v21
          %v23 = vld [vmem:[%s17 + $0x10] sm:%s10]
          %24 = vst [vmem:[%s18 + $0x20] sm:%s10] %v23
          %v25 = vld [vmem:[%s17 + $0x18] sm:%s10]
          %26 = vst [vmem:[%s18 + $0x30] sm:%s10] %v25
          %v27 = vld [vmem:[%s17 + $0x20] sm:%s10]
          %28 = vst [vmem:[%s18 + $0x40] sm:%s10] %v27
          %v29 = vld [vmem:[%s17 + $0x28] sm:%s10]
          %30 = vst [vmem:[%s18 + $0x50] sm:%s10] %v29
          %v31 = vld [vmem:[%s17 + $0x30] sm:%s10]
          %32 = vst [vmem:[%s18 + $0x60] sm:%s10] %v31
          %v33 = vld [vmem:[%s17 + $0x38] sm:%s10]
          %34 = vst [vmem:[%s18 + $0x70] sm:%s10] %v33
        $region18: #{reverse.0} parent=12 // loop_footer
          %s16 = sadd.s32 1, %s12
        $region19: #{reverse.0} parent=12 // loop_footer_branch
          %11 = sbr.rel target = $region15
        $region20: #{reverse.0} parent=12 // loop_exit
          _
      $region13: #{reverse.0} parent=4 // pred_fallthru
        _
    $region5: #{reverse.0} parent=1 // pred_fallthru
      _
    %63 = vnop
    %s64 = scalar_lea.vmem [#allocation0], 7
    %v65 = vld [vmem:[%s64] ss:$-1 sm:$0xff]
    %v66 = vrot.slane %v65, 1
    %67 = vst [vmem:[#allocation1] sm:$0xff] %v66
    %s68 = scalar_lea.vmem [#allocation0], 8
    %s69 = scalar_lea.vmem %s68, 7 [#allocation0]
    %v70 = vld [vmem:[%s69] ss:$-1 sm:$0xff]
    %v71 = vrot.slane %v70, 1
    %v72 = vlaneseq
    %v73 = vshrl.u32 %v72, 7
    %vm74 = vcmp.lt.s32.totalorder %v73, 7
    %75 = vst.msk [vmem:[#allocation1] sm:$0xff] %vm74, %v71
    %s76 = scalar_lea.vmem [#allocation1], 8
    %s77 = scalar_lea.vmem [#allocation0], 16
    %s78 = scalar_lea.vmem %s77, 7 [#allocation0]
    %v79 = vld [vmem:[%s78] ss:$-1 sm:$0xff]
    %v80 = vrot.slane %v79, 1
    %81 = vst [vmem:[%s76] sm:$0xff] %v80
    %s82 = scalar_lea.vmem %s77, 8 [#allocation0]
    %s83 = scalar_lea.vmem %s82, 7 [#allocation0]
    %v84 = vld [vmem:[%s83] ss:$-1 sm:$0xff]
    %v85 = vrot.slane %v84, 1
    %v86 = vlaneseq
    %v87 = vshrl.u32 %v86, 7
    %vm88 = vcmp.lt.s32.totalorder %v87, 7
    %89 = vst.msk [vmem:[%s76] sm:$0xff] %vm88, %v85
    %s90 = scalar_lea.vmem [#allocation1], 16
    %s91 = scalar_lea.vmem [#allocation0], 32
    %s92 = scalar_lea.vmem %s91, 7 [#allocation0]
    %v93 = vld [vmem:[%s92] ss:$-1 sm:$0xff]
    %v94 = vrot.slane %v93, 1
    %95 = vst [vmem:[%s90] sm:$0xff] %v94
    %s96 = scalar_lea.vmem %s91, 8 [#allocation0]
    %s97 = scalar_lea.vmem %s96, 7 [#allocation0]
    %v98 = vld [vmem:[%s97] ss:$-1 sm:$0xff]
    %v99 = vrot.slane %v98, 1
    %v100 = vlaneseq
    %v101 = vshrl.u32 %v100, 7
    %vm102 = vcmp.lt.s32.totalorder %v101, 7
    %103 = vst.msk [vmem:[%s90] sm:$0xff] %vm102, %v99
    %s104 = scalar_lea.vmem [#allocation1], 24
    %s105 = scalar_lea.vmem [#allocation0], 48
    %s106 = scalar_lea.vmem %s105, 7 [#allocation0]
    %v107 = vld [vmem:[%s106] ss:$-1 sm:$0xff]
    %v108 = vrot.slane %v107, 1
    %109 = vst [vmem:[%s104] sm:$0xff] %v108
    %s110 = scalar_lea.vmem %s105, 8 [#allocation0]
    %s111 = scalar_lea.vmem %s110, 7 [#allocation0]
    %v112 = vld [vmem:[%s111] ss:$-1 sm:$0xff]
    %v113 = vrot.slane %v112, 1
    %v114 = vlaneseq
    %v115 = vshrl.u32 %v114, 7
    %vm116 = vcmp.lt.s32.totalorder %v115, 7
    %117 = vst.msk [vmem:[%s104] sm:$0xff] %vm116, %v113
    %s118 = scalar_lea.vmem [#allocation1], 32
    %s119 = scalar_lea.vmem [#allocation0], 64
    %s120 = scalar_lea.vmem %s119, 7 [#allocation0]
    %v121 = vld [vmem:[%s120] ss:$-1 sm:$0xff]
    %v122 = vrot.slane %v121, 1
    %123 = vst [vmem:[%s118] sm:$0xff] %v122
    %s124 = scalar_lea.vmem %s119, 8 [#allocation0]
    %s125 = scalar_lea.vmem %s124, 7 [#allocation0]
    %v126 = vld [vmem:[%s125] ss:$-1 sm:$0xff]
    %v127 = vrot.slane %v126, 1
    %v128 = vlaneseq
    %v129 = vshrl.u32 %v128, 7
    %vm130 = vcmp.lt.s32.totalorder %v129, 7
    %131 = vst.msk [vmem:[%s118] sm:$0xff] %vm130, %v127
    %s132 = scalar_lea.vmem [#allocation1], 40
    %s133 = scalar_lea.vmem [#allocation0], 80
    %s134 = scalar_lea.vmem %s133, 7 [#allocation0]
    %v135 = vld [vmem:[%s134] ss:$-1 sm:$0xff]
    %v136 = vrot.slane %v135, 1
    %137 = vst [vmem:[%s132] sm:$0xff] %v136
    %s138 = scalar_lea.vmem %s133, 8 [#allocation0]
    %s139 = scalar_lea.vmem %s138, 7 [#allocation0]
    %v140 = vld [vmem:[%s139] ss:$-1 sm:$0xff]
    %v141 = vrot.slane %v140, 1
    %v142 = vlaneseq
    %v143 = vshrl.u32 %v142, 7
    %vm144 = vcmp.lt.s32.totalorder %v143, 7
    %145 = vst.msk [vmem:[%s132] sm:$0xff] %vm144, %v141
    %s146 = scalar_lea.vmem [#allocation1], 48
    %s147 = scalar_lea.vmem [#allocation0], 96
    %s148 = scalar_lea.vmem %s147, 7 [#allocation0]
    %v149 = vld [vmem:[%s148] ss:$-1 sm:$0xff]
    %v150 = vrot.slane %v149, 1
    %151 = vst [vmem:[%s146] sm:$0xff] %v150
    %s152 = scalar_lea.vmem %s147, 8 [#allocation0]
    %s153 = scalar_lea.vmem %s152, 7 [#allocation0]
    %v154 = vld [vmem:[%s153] ss:$-1 sm:$0xff]
    %v155 = vrot.slane %v154, 1
    %v156 = vlaneseq
    %v157 = vshrl.u32 %v156, 7
    %vm158 = vcmp.lt.s32.totalorder %v157, 7
    %159 = vst.msk [vmem:[%s146] sm:$0xff] %vm158, %v155
    %s160 = scalar_lea.vmem [#allocation1], 56
    %s161 = scalar_lea.vmem [#allocation0], 112
    %s162 = scalar_lea.vmem %s161, 7 [#allocation0]
    %v163 = vld [vmem:[%s162] ss:$-1 sm:$0xff]
    %v164 = vrot.slane %v163, 1
    %165 = vst [vmem:[%s160] sm:$0xff] %v164
    %s166 = scalar_lea.vmem %s161, 8 [#allocation0]
    %s167 = scalar_lea.vmem %s166, 7 [#allocation0]
    %v168 = vld [vmem:[%s167] ss:$-1 sm:$0xff]
    %v169 = vrot.slane %v168, 1
    %v170 = vlaneseq
    %v171 = vshrl.u32 %v170, 7
    %vm172 = vcmp.lt.s32.totalorder %v171, 7
    %173 = vst.msk [vmem:[%s160] sm:$0xff] %vm172, %v169
    // Predicated region
    $region36: #{reverse.0} parent=1 // pred_check
      _
    $region37: #{reverse.0} parent=1 // pred_check_branch
      %175 = sbr.rel (0) target = $region39
    $region38: #{reverse.0} parent=1 // pred_region
      // Predicated region
      $region40: #{reverse.0} parent=38 // pred_check
        _
      $region41: #{reverse.0} parent=38 // pred_check_branch
        %177 = sbr.rel (0) target = $region43
      $region42: #{reverse.0} parent=38 // pred_region
        // Predicated region
        $region55: #{reverse.0} parent=42 // pred_check
          _
        $region56: #{reverse.0} parent=42 // pred_check_branch
          %207 = sbr.rel (0) target = $region58
        $region57: #{reverse.0} parent=42 // pred_region
          loop: start=0, step=1, limit=1
          $region59: #{reverse.0} parent=57 // loop_pre_header
            _
          $region60: #{reverse.0} parent=57 // loop_header
            %s209 = sphi 0, %s213
            %p210 = scmp.ge.s32.totalorder %s209, 1
            %s214 = sphi [#allocation1], [#allocation1]
            %s215 = sphi %s1, %s1
          $region61: #{reverse.0} parent=57 // loop_header_branch
            %212 = sbr.rel (%p210) target = $region65
          $region62: #{reverse.0} parent=57 // loop_body
            %v216 = vld [vmem:[%s214] sm:$0xff]
            %217 = vst [vmem:[%s215] sm:$0xff] %v216
            %v218 = vld [vmem:[%s214 + $0x8] sm:$0xff]
            %219 = vst [vmem:[%s215 + $0x8] sm:$0xff] %v218
            %v220 = vld [vmem:[%s214 + $0x10] sm:$0xff]
            %221 = vst [vmem:[%s215 + $0x10] sm:$0xff] %v220
            %v222 = vld [vmem:[%s214 + $0x18] sm:$0xff]
            %223 = vst [vmem:[%s215 + $0x18] sm:$0xff] %v222
            %v224 = vld [vmem:[%s214 + $0x20] sm:$0xff]
            %225 = vst [vmem:[%s215 + $0x20] sm:$0xff] %v224
            %v226 = vld [vmem:[%s214 + $0x28] sm:$0xff]
            %227 = vst [vmem:[%s215 + $0x28] sm:$0xff] %v226
            %v228 = vld [vmem:[%s214 + $0x30] sm:$0xff]
            %229 = vst [vmem:[%s215 + $0x30] sm:$0xff] %v228
            %v230 = vld [vmem:[%s214 + $0x38] sm:$0xff]
            %231 = vst [vmem:[%s215 + $0x38] sm:$0xff] %v230
          $region63: #{reverse.0} parent=57 // loop_footer
            %s213 = sadd.s32 1, %s209
          $region64: #{reverse.0} parent=57 // loop_footer_branch
            %208 = sbr.rel target = $region60
          $region65: #{reverse.0} parent=57 // loop_exit
            _
        $region58: #{reverse.0} parent=42 // pred_fallthru
          _
        // Predicated region
        $region66: #{reverse.0} parent=42 // pred_check
          _
        $region67: #{reverse.0} parent=42 // pred_check_branch
          %233 = sbr.rel target = $region69
        $region68: #{reverse.0} parent=42 // pred_region
          _
        $region69: #{reverse.0} parent=42 // pred_fallthru
          _
      $region43: #{reverse.0} parent=38 // pred_fallthru
        _
      // Predicated region
      $region44: #{reverse.0} parent=38 // pred_check
        _
      $region45: #{reverse.0} parent=38 // pred_check_branch
        %179 = sbr.rel target = $region47
      $region46: #{reverse.0} parent=38 // pred_region
        %s181 = ssub.s32 256, 1
        loop: start=0, step=1, limit=1
        $region48: #{reverse.0} parent=46 // loop_pre_header
          _
        $region49: #{reverse.0} parent=46 // loop_header
          %s183 = sphi 0, %s187
          %p184 = scmp.ge.s32.totalorder %s183, 1
          %s188 = sphi [#allocation1], [#allocation1]
          %s189 = sphi %s1, %s1
        $region50: #{reverse.0} parent=46 // loop_header_branch
          %186 = sbr.rel (%p184) target = $region54
        $region51: #{reverse.0} parent=46 // loop_body
          %v190 = vld [vmem:[%s188] sm:%s181]
          %191 = vst [vmem:[%s189] sm:%s181] %v190
          %v192 = vld [vmem:[%s188 + $0x8] sm:%s181]
          %193 = vst [vmem:[%s189 + $0x8] sm:%s181] %v192
          %v194 = vld [vmem:[%s188 + $0x10] sm:%s181]
          %195 = vst [vmem:[%s189 + $0x10] sm:%s181] %v194
          %v196 = vld [vmem:[%s188 + $0x18] sm:%s181]
          %197 = vst [vmem:[%s189 + $0x18] sm:%s181] %v196
          %v198 = vld [vmem:[%s188 + $0x20] sm:%s181]
          %199 = vst [vmem:[%s189 + $0x20] sm:%s181] %v198
          %v200 = vld [vmem:[%s188 + $0x28] sm:%s181]
          %201 = vst [vmem:[%s189 + $0x28] sm:%s181] %v200
          %v202 = vld [vmem:[%s188 + $0x30] sm:%s181]
          %203 = vst [vmem:[%s189 + $0x30] sm:%s181] %v202
          %v204 = vld [vmem:[%s188 + $0x38] sm:%s181]
          %205 = vst [vmem:[%s189 + $0x38] sm:%s181] %v204
        $region52: #{reverse.0} parent=46 // loop_footer
          %s187 = sadd.s32 1, %s183
        $region53: #{reverse.0} parent=46 // loop_footer_branch
          %182 = sbr.rel target = $region49
        $region54: #{reverse.0} parent=46 // loop_exit
          _
      $region47: #{reverse.0} parent=38 // pred_fallthru
        _
    $region39: #{reverse.0} parent=1 // pred_fallthru
      _
    %234 = vnop

// kernel: spectral_mamba_forward.4
$region0: #{spectral_mamba_forward.4}
  #allocation0 [shape = 'u32[]', space=smem, size = 0x4, offset = 0x4, fixed_abs, tag = 'smem constant byte address 0x4 - core index']
  #allocation1 [shape = 'u32[72,128]{1,0:T(1,128)}', space=vmem, size = 0x9000, scoped, tag = 'internal scratch']
  %s0 = inlined_call_operand.vmem [shape: f32[2,4,144], index: 0, kind: input, shape index: {}]
  %s1 = inlined_call_operand.vmem [shape: f32[2,4,144], index: 1, kind: input, shape index: {}]
  %s2 = inlined_call_operand.vmem [shape: f32[4,4], index: 2, kind: input, shape index: {}]
  %s3 = inlined_call_operand.vmem [shape: f32[4,4], index: 3, kind: input, shape index: {}]
  %s4 = inlined_call_operand.vmem [shape: f32[4,4], index: 4, kind: input, shape index: {}]
  %s5 = inlined_call_operand.vmem [shape: f32[4,4], index: 5, kind: input, shape index: {}]
  %s6 = inlined_call_operand.vmem [shape: f32[4,1], index: 6, kind: input, shape index: {}]
  %s7 = inlined_call_operand.vmem [shape: f32[4,1], index: 7, kind: input, shape index: {}]
  %s8 = inlined_call_operand.vmem [shape: bf16[2,4,144], index: 8, kind: output, shape index: {0}]
  %s9 = inlined_call_operand.vmem [shape: bf16[2,4,144], index: 9, kind: output, shape index: {1}]
  %10 = xla_tuple %s8, %s9
  %s11 = sld [smem:[#allocation0]]
  $region73: #{spectral_mamba_forward.4} parent=0
    _
  %s13 = ssub.s32 1, %s11
  %s14 = scalar_select 0, %s13, %s11
  loop: start=0, step=1, limit=6
  $region2: #{spectral_mamba_forward.4} parent=0 // loop_pre_header
    _
  $region3: #{spectral_mamba_forward.4} parent=0 // loop_header
    %s16 = sphi 0, %s20
    %p17 = scmp.ge.s32.totalorder %s16, 6
    %s23 = sphi 0, %s35
    %s24 = sphi 0, %s31
    %s25 = sphi 0, %s23
    %s26 = sphi 0, %s24
    %s27 = sphi 0, %s25
    %s28 = sphi 0, %s26
    %s40 = sphi 0, %s42
    %s43 = sphi 0, %s40
    %s44 = sphi 0, %s43
    %s60 = sphi 0, %s44
    %s68 = sphi 0, %s70
    %s71 = sphi 0, %s68
    %s72 = sphi 0, %s71
    %s88 = sphi 0, %s72
    %s92 = sphi 0, %s92
    %s94 = sphi 0, %s92
    %s95 = sphi 0, %s94
    %s109 = sphi 0, %s95
    %s113 = sphi 0, %s113
    %s115 = sphi 0, %s113
    %s116 = sphi 0, %s115
    %s130 = sphi 0, %s116
    %s134 = sphi 0, %s134
    %s136 = sphi 0, %s134
    %s137 = sphi 0, %s136
    %s151 = sphi 0, %s137
    %s155 = sphi 0, %s155
    %s157 = sphi 0, %s155
    %s158 = sphi 0, %s157
    %s172 = sphi 0, %s158
    %s176 = sphi 0, %s176
    %s178 = sphi 0, %s176
    %s179 = sphi 0, %s178
    %s193 = sphi 0, %s179
    %s197 = sphi 0, %s197
    %s199 = sphi 0, %s197
    %s200 = sphi 0, %s199
    %s214 = sphi 0, %s200
    %s222 = sphi 0, %s224
    %s225 = sphi 0, %s222
    %s226 = sphi 0, %s225
    %s242 = sphi 0, %s226
    %s250 = sphi 0, %s252
    %s253 = sphi 0, %s250
    %s254 = sphi 0, %s253
    %s270 = sphi 0, %s254
  $region4: #{spectral_mamba_forward.4} parent=0 // loop_header_branch
    %19 = sbr.rel (%p17) target = $region8
  $region5: #{spectral_mamba_forward.4} parent=0 // loop_body
    %s21 = ssub.s32 %s16, 1
    %s22 = ssub.s32 %s16, 2
    %s29 = sadd.s32 1, %s24
    %p30 = scmp.ge.s32.totalorder %s29, 2
    %s31 = scalar_select %p30, 0, %s29
    %s32 = sadd.s32 1, %s23
    %s33 = scalar_select %p30, %s32, %s23
    %p34 = scmp.ge.s32.totalorder %s33, 2
    %s35 = scalar_select %p34, 0, %s33
    %s36 = ssub.s32 %s23, %s35
    %s37 = ssub.s32 %s24, %s31
    %s38 = sor.u32 %s36, %s37
    %p39 = scmp.eq.s32.totalorder %s38, 0
    %s41 = sadd.s32 %s40, 1
    %s42 = scalar_select %p39, %s40, %s41
    %p45 = pneg %p39
    %p46 = scmp.eq.s32.totalorder %s16, 3
    %p47 = por %p45, %p46
    %p48 = scmp.ne.s32.totalorder %s40, %s43
    %p49 = scmp.eq.s32.totalorder %s16, 0
    %p50 = por %p48, %p49
    %p51 = scmp.ne.s32.totalorder %s40, %s43
    %p52 = scmp.eq.s32.totalorder %s21, 3
    %p53 = por %p51, %p52
    %p54 = scmp.ne.s32.totalorder %s43, %s44
    %p55 = scmp.eq.s32.totalorder %s21, 0
    %p56 = por %p54, %p55
    %p57 = scmp.ne.s32.totalorder %s43, %s44
    %p58 = scmp.eq.s32.totalorder %s22, 3
    %p59 = por %p57, %p58
    %p61 = scmp.ne.s32.totalorder %s44, %s60
    %p62 = scmp.eq.s32.totalorder %s22, 0
    %p63 = por %p61, %p62
    %s64 = ssub.s32 %s23, %s35
    %s65 = ssub.s32 %s24, %s31
    %s66 = sor.u32 %s64, %s65
    %p67 = scmp.eq.s32.totalorder %s66, 0
    %s69 = sadd.s32 %s68, 1
    %s70 = scalar_select %p67, %s68, %s69
    %p73 = pneg %p67
    %p74 = scmp.eq.s32.totalorder %s16, 3
    %p75 = por %p73, %p74
    %p76 = scmp.ne.s32.totalorder %s68, %s71
    %p77 = scmp.eq.s32.totalorder %s16, 0
    %p78 = por %p76, %p77
    %p79 = scmp.ne.s32.totalorder %s68, %s71
    %p80 = scmp.eq.s32.totalorder %s21, 3
    %p81 = por %p79, %p80
    %p82 = scmp.ne.s32.totalorder %s71, %s72
    %p83 = scmp.eq.s32.totalorder %s21, 0
    %p84 = por %p82, %p83
    %p85 = scmp.ne.s32.totalorder %s71, %s72
    %p86 = scmp.eq.s32.totalorder %s22, 3
    %p87 = por %p85, %p86
    %p89 = scmp.ne.s32.totalorder %s72, %s88
    %p90 = scmp.eq.s32.totalorder %s22, 0
    %p91 = por %p89, %p90
    %s93 = sadd.s32 %s92, 1
    %p96 = scmp.eq.s32.totalorder %s16, 3
    %p97 = scmp.ne.s32.totalorder %s92, %s94
    %p98 = scmp.eq.s32.totalorder %s16, 0
    %p99 = por %p97, %p98
    %p100 = scmp.ne.s32.totalorder %s92, %s94
    %p101 = scmp.eq.s32.totalorder %s21, 3
    %p102 = por %p100, %p101
    %p103 = scmp.ne.s32.totalorder %s94, %s95
    %p104 = scmp.eq.s32.totalorder %s21, 0
    %p105 = por %p103, %p104
    %p106 = scmp.ne.s32.totalorder %s94, %s95
    %p107 = scmp.eq.s32.totalorder %s22, 3
    %p108 = por %p106, %p107
    %p110 = scmp.ne.s32.totalorder %s95, %s109
    %p111 = scmp.eq.s32.totalorder %s22, 0
    %p112 = por %p110, %p111
    %s114 = sadd.s32 %s113, 1
    %p117 = scmp.eq.s32.totalorder %s16, 3
    %p118 = scmp.ne.s32.totalorder %s113, %s115
    %p119 = scmp.eq.s32.totalorder %s16, 0
    %p120 = por %p118, %p119
    %p121 = scmp.ne.s32.totalorder %s113, %s115
    %p122 = scmp.eq.s32.totalorder %s21, 3
    %p123 = por %p121, %p122
    %p124 = scmp.ne.s32.totalorder %s115, %s116
    %p125 = scmp.eq.s32.totalorder %s21, 0
    %p126 = por %p124, %p125
    %p127 = scmp.ne.s32.totalorder %s115, %s116
    %p128 = scmp.eq.s32.totalorder %s22, 3
    %p129 = por %p127, %p128
    %p131 = scmp.ne.s32.totalorder %s116, %s130
    %p132 = scmp.eq.s32.totalorder %s22, 0
    %p133 = por %p131, %p132
    %s135 = sadd.s32 %s134, 1
    %p138 = scmp.eq.s32.totalorder %s16, 3
    %p139 = scmp.ne.s32.totalorder %s134, %s136
    %p140 = scmp.eq.s32.totalorder %s16, 0
    %p141 = por %p139, %p140
    %p142 = scmp.ne.s32.totalorder %s134, %s136
    %p143 = scmp.eq.s32.totalorder %s21, 3
    %p144 = por %p142, %p143
    %p145 = scmp.ne.s32.totalorder %s136, %s137
    %p146 = scmp.eq.s32.totalorder %s21, 0
    %p147 = por %p145, %p146
    %p148 = scmp.ne.s32.totalorder %s136, %s137
    %p149 = scmp.eq.s32.totalorder %s22, 3
    %p150 = por %p148, %p149
    %p152 = scmp.ne.s32.totalorder %s137, %s151
    %p153 = scmp.eq.s32.totalorder %s22, 0
    %p154 = por %p152, %p153
    %s156 = sadd.s32 %s155, 1
    %p159 = scmp.eq.s32.totalorder %s16, 3
    %p160 = scmp.ne.s32.totalorder %s155, %s157
    %p161 = scmp.eq.s32.totalorder %s16, 0
    %p162 = por %p160, %p161
    %p163 = scmp.ne.s32.totalorder %s155, %s157
    %p164 = scmp.eq.s32.totalorder %s21, 3
    %p165 = por %p163, %p164
    %p166 = scmp.ne.s32.totalorder %s157, %s158
    %p167 = scmp.eq.s32.totalorder %s21, 0
    %p168 = por %p166, %p167
    %p169 = scmp.ne.s32.totalorder %s157, %s158
    %p170 = scmp.eq.s32.totalorder %s22, 3
    %p171 = por %p169, %p170
    %p173 = scmp.ne.s32.totalorder %s158, %s172
    %p174 = scmp.eq.s32.totalorder %s22, 0
    %p175 = por %p173, %p174
    %s177 = sadd.s32 %s176, 1
    %p180 = scmp.eq.s32.totalorder %s16, 3
    %p181 = scmp.ne.s32.totalorder %s176, %s178
    %p182 = scmp.eq.s32.totalorder %s16, 0
    %p183 = por %p181, %p182
    %p184 = scmp.ne.s32.totalorder %s176, %s178
    %p185 = scmp.eq.s32.totalorder %s21, 3
    %p186 = por %p184, %p185
    %p187 = scmp.ne.s32.totalorder %s178, %s179
    %p188 = scmp.eq.s32.totalorder %s21, 0
    %p189 = por %p187, %p188
    %p190 = scmp.ne.s32.totalorder %s178, %s179
    %p191 = scmp.eq.s32.totalorder %s22, 3
    %p192 = por %p190, %p191
    %p194 = scmp.ne.s32.totalorder %s179, %s193
    %p195 = scmp.eq.s32.totalorder %s22, 0
    %p196 = por %p194, %p195
    %s198 = sadd.s32 %s197, 1
    %p201 = scmp.eq.s32.totalorder %s16, 3
    %p202 = scmp.ne.s32.totalorder %s197, %s199
    %p203 = scmp.eq.s32.totalorder %s16, 0
    %p204 = por %p202, %p203
    %p205 = scmp.ne.s32.totalorder %s197, %s199
    %p206 = scmp.eq.s32.totalorder %s21, 3
    %p207 = por %p205, %p206
    %p208 = scmp.ne.s32.totalorder %s199, %s200
    %p209 = scmp.eq.s32.totalorder %s21, 0
    %p210 = por %p208, %p209
    %p211 = scmp.ne.s32.totalorder %s199, %s200
    %p212 = scmp.eq.s32.totalorder %s22, 3
    %p213 = por %p211, %p212
    %p215 = scmp.ne.s32.totalorder %s200, %s214
    %p216 = scmp.eq.s32.totalorder %s22, 0
    %p217 = por %p215, %p216
    %s218 = ssub.s32 %s23, %s35
    %s219 = ssub.s32 %s24, %s31
    %s220 = sor.u32 %s218, %s219
    %p221 = scmp.eq.s32.totalorder %s220, 0
    %s223 = sadd.s32 %s222, 1
    %s224 = scalar_select %p221, %s222, %s223
    %p227 = pneg %p221
    %p228 = scmp.eq.s32.totalorder %s16, 3
    %p229 = por %p227, %p228
    %p230 = scmp.ne.s32.totalorder %s222, %s225
    %p231 = scmp.eq.s32.totalorder %s16, 0
    %p232 = por %p230, %p231
    %p233 = scmp.ne.s32.totalorder %s222, %s225
    %p234 = scmp.eq.s32.totalorder %s21, 3
    %p235 = por %p233, %p234
    %p236 = scmp.ne.s32.totalorder %s225, %s226
    %p237 = scmp.eq.s32.totalorder %s21, 0
    %p238 = por %p236, %p237
    %p239 = scmp.ne.s32.totalorder %s225, %s226
    %p240 = scmp.eq.s32.totalorder %s22, 3
    %p241 = por %p239, %p240
    %p243 = scmp.ne.s32.totalorder %s226, %s242
    %p244 = scmp.eq.s32.totalorder %s22, 0
    %p245 = por %p243, %p244
    %s246 = ssub.s32 %s23, %s35
    %s247 = ssub.s32 %s24, %s31
    %s248 = sor.u32 %s246, %s247
    %p249 = scmp.eq.s32.totalorder %s248, 0
    %s251 = sadd.s32 %s250, 1
    %s252 = scalar_select %p249, %s250, %s251
    %p255 = pneg %p249
    %p256 = scmp.eq.s32.totalorder %s16, 3
    %p257 = por %p255, %p256
    %p258 = scmp.ne.s32.totalorder %s250, %s253
    %p259 = scmp.eq.s32.totalorder %s16, 0
    %p260 = por %p258, %p259
    %p261 = scmp.ne.s32.totalorder %s250, %s253
    %p262 = scmp.eq.s32.totalorder %s21, 3
    %p263 = por %p261, %p262
    %p264 = scmp.ne.s32.totalorder %s253, %s254
    %p265 = scmp.eq.s32.totalorder %s21, 0
    %p266 = por %p264, %p265
    %p267 = scmp.ne.s32.totalorder %s253, %s254
    %p268 = scmp.eq.s32.totalorder %s22, 3
    %p269 = por %p267, %p268
    %p271 = scmp.ne.s32.totalorder %s254, %s270
    %p272 = scmp.eq.s32.totalorder %s22, 0
    %p273 = por %p271, %p272
    %p274 = scmp.le.s32.totalorder 1, %s16
    %p275 = scmp.lt.s32.totalorder %s16, 5
    %p276 = pnand %p274, %p275
    %p277 = pneg %p276
    // Predicated region
    $region9: #{spectral_mamba_forward.4} parent=5 // pred_check
      _
    $region10: #{spectral_mamba_forward.4} parent=5 // pred_check_branch
      %279 = sbr.rel (%p276) target = $region12
    $region11: #{spectral_mamba_forward.4} parent=5 // pred_region
      %s280 = ssub.s32 %s16, 1
      // Predicated region
      $region13: #{spectral_mamba_forward.4} parent=11 // pred_check
        %p281 = pneg %p105
      $region14: #{spectral_mamba_forward.4} parent=11 // pred_check_branch
        %283 = sbr.rel (%p281) target = $region16
      $region15: #{spectral_mamba_forward.4} parent=11 // pred_region
        _
      $region16: #{spectral_mamba_forward.4} parent=11 // pred_fallthru
        _
      // Predicated region
      $region17: #{spectral_mamba_forward.4} parent=11 // pred_check
        %p284 = pneg %p126
      $region18: #{spectral_mamba_forward.4} parent=11 // pred_check_branch
        %286 = sbr.rel (%p284) target = $region20
      $region19: #{spectral_mamba_forward.4} parent=11 // pred_region
        _
      $region20: #{spectral_mamba_forward.4} parent=11 // pred_fallthru
        _
      // Predicated region
      $region21: #{spectral_mamba_forward.4} parent=11 // pred_check
        %p287 = pneg %p147
      $region22: #{spectral_mamba_forward.4} parent=11 // pred_check_branch
        %289 = sbr.rel (%p287) target = $region24
      $region23: #{spectral_mamba_forward.4} parent=11 // pred_region
        _
      $region24: #{spectral_mamba_forward.4} parent=11 // pred_fallthru
        _
      // Predicated region
      $region25: #{spectral_mamba_forward.4} parent=11 // pred_check
        %p290 = pneg %p168
      $region26: #{spectral_mamba_forward.4} parent=11 // pred_check_branch
        %292 = sbr.rel (%p290) target = $region28
      $region27: #{spectral_mamba_forward.4} parent=11 // pred_region
        _
      $region28: #{spectral_mamba_forward.4} parent=11 // pred_fallthru
        _
      // Predicated region
      $region29: #{spectral_mamba_forward.4} parent=11 // pred_check
        %p293 = pneg %p189
      $region30: #{spectral_mamba_forward.4} parent=11 // pred_check_branch
        %295 = sbr.rel (%p293) target = $region32
      $region31: #{spectral_mamba_forward.4} parent=11 // pred_region
        _
      $region32: #{spectral_mamba_forward.4} parent=11 // pred_fallthru
        _
      // Predicated region
      $region33: #{spectral_mamba_forward.4} parent=11 // pred_check
        %p296 = pneg %p210
      $region34: #{spectral_mamba_forward.4} parent=11 // pred_check_branch
        %298 = sbr.rel (%p296) target = $region36
      $region35: #{spectral_mamba_forward.4} parent=11 // pred_region
        _
      $region36: #{spectral_mamba_forward.4} parent=11 // pred_fallthru
        _
    $region12: #{spectral_mamba_forward.4} parent=5 // pred_fallthru
      _
    %p299 = scmp.lt.s32.totalorder %s16, 4
    // Predicated region
    $region37: #{spectral_mamba_forward.4} parent=5 // pred_check
      %p300 = pneg %p299
    $region38: #{spectral_mamba_forward.4} parent=5 // pred_check_branch
      %302 = sbr.rel (%p300) target = $region40
    $region39: #{spectral_mamba_forward.4} parent=5 // pred_region
      // Predicated region
      $region41: #{spectral_mamba_forward.4} parent=39 // pred_check
        %p303 = pneg %p50
      $region42: #{spectral_mamba_forward.4} parent=39 // pred_check_branch
        %305 = sbr.rel (%p303) target = $region44
      $region43: #{spectral_mamba_forward.4} parent=39 // pred_region
        %p306 = scmp.lt.s32.totalorder %s23, 1
        %s307 = scalar_select %p306, %s23, 1
        %p308 = scmp.lt.s32.totalorder %s24, 1
        %s309 = scalar_select %p308, %s24, 1
        %s310 = smul.addr %s307, 2
        %s311 = sadd.s32 %s309, %s310
        %s312 = smul.addr %s311, 4
        %s313 = scalar_lea.vmem %s0, %s312
      $region44: #{spectral_mamba_forward.4} parent=39 // pred_fallthru
        _
      // Predicated region
      $region45: #{spectral_mamba_forward.4} parent=39 // pred_check
        %p314 = pneg %p78
      $region46: #{spectral_mamba_forward.4} parent=39 // pred_check_branch
        %316 = sbr.rel (%p314) target = $region48
      $region47: #{spectral_mamba_forward.4} parent=39 // pred_region
        %p317 = scmp.lt.s32.totalorder %s23, 1
        %s318 = scalar_select %p317, %s23, 1
        %p319 = scmp.lt.s32.totalorder %s24, 1
        %s320 = scalar_select %p319, %s24, 1
        %s321 = smul.addr %s318, 2
        %s322 = sadd.s32 %s320, %s321
        %s323 = smul.addr %s322, 4
        %s324 = scalar_lea.vmem %s1, %s323
      $region48: #{spectral_mamba_forward.4} parent=39 // pred_fallthru
        _
    $region40: #{spectral_mamba_forward.4} parent=5 // pred_fallthru
      _
    %p325 = scmp.le.s32.totalorder 1, %s16
    %p326 = scmp.lt.s32.totalorder %s16, 5
    %p327 = pnand %p325, %p326
    %p328 = pneg %p327
    // Predicated region
    $region49: #{spectral_mamba_forward.4} parent=5 // pred_check
      _
    $region50: #{spectral_mamba_forward.4} parent=5 // pred_check_branch
      %330 = sbr.rel (%p327) target = $region52
    $region51: #{spectral_mamba_forward.4} parent=5 // pred_region
      %s331 = ssub.s32 %s16, 1
      %p332 = scmp.lt.s32.totalorder %s25, 1
      %s333 = scalar_select %p332, %s25, 1
      %p334 = scmp.lt.s32.totalorder %s26, 1
      %s335 = scalar_select %p334, %s26, 1
      %s336 = smul.addr %s333, 2
      %s337 = sadd.s32 %s335, %s336
      %s338 = smul.addr %s337, 4
      %s339 = scalar_lea.vmem %s0, %s338
      %p340 = pneg %p56
      %p341 = pneg %p53
      %p342 = scmp.lt.s32.totalorder %s25, 1
      %s343 = scalar_select %p342, %s25, 1
      %p344 = scmp.lt.s32.totalorder %s26, 1
      %s345 = scalar_select %p344, %s26, 1
      %s346 = smul.addr %s343, 2
      %s347 = sadd.s32 %s345, %s346
      %s348 = smul.addr %s347, 4
      %s349 = scalar_lea.vmem %s1, %s348
      %p350 = pneg %p84
      %p351 = pneg %p81
      %p352 = pneg %p105
      %p353 = pneg %p102
      %p354 = pneg %p126
      %p355 = pneg %p123
      %p356 = pneg %p147
      %p357 = pneg %p144
      %p358 = pneg %p168
      %p359 = pneg %p165
      %p360 = pneg %p189
      %p361 = pneg %p186
      %p362 = pneg %p210
      %p363 = pneg %p207
      %p364 = pneg %p238
      %p365 = pneg %p235
      %p366 = scmp.lt.s32.totalorder %s25, 1
      %s367 = scalar_select %p366, %s25, 1
      %p368 = scmp.lt.s32.totalorder %s26, 1
      %s369 = scalar_select %p368, %s26, 1
      %s370 = smul.addr %s367, 2
      %s371 = sadd.s32 %s369, %s370
      %s372 = smul.addr %s371, 2
      %s373 = scalar_lea.vmem %s8, %s372
      %p374 = pneg %p266
      %p375 = pneg %p263
      %p376 = scmp.lt.s32.totalorder %s25, 1
      %s377 = scalar_select %p376, %s25, 1
      %p378 = scmp.lt.s32.totalorder %s26, 1
      %s379 = scalar_select %p378, %s26, 1
      %s380 = smul.addr %s377, 2
      %s381 = sadd.s32 %s379, %s380
      %s382 = smul.addr %s381, 2
      %s383 = scalar_lea.vmem %s9, %s382
      %p384 = scmp.lt.s32.totalorder %s25, 1
      %s385 = scalar_select %p384, %s25, 1
      %p386 = scmp.lt.s32.totalorder %s26, 1
      %s387 = scalar_select %p386, %s26, 1
      %s388 = smul.addr %s385, 2
      %s389 = sadd.s32 %s387, %s388
      %s390 = smul.addr %s389, 4
      %s391 = scalar_lea.vmem %s0, %s390
      %p392 = scmp.lt.s32.totalorder %s25, 1
      %s393 = scalar_select %p392, %s25, 1
      %p394 = scmp.lt.s32.totalorder %s26, 1
      %s395 = scalar_select %p394, %s26, 1
      %s396 = smul.addr %s393, 2
      %s397 = sadd.s32 %s395, %s396
      %s398 = smul.addr %s397, 4
      %s399 = scalar_lea.vmem %s1, %s398
      %p400 = scmp.lt.s32.totalorder %s25, 1
      %s401 = scalar_select %p400, %s25, 1
      %p402 = scmp.lt.s32.totalorder %s26, 1
      %s403 = scalar_select %p402, %s26, 1
      %s404 = smul.addr %s401, 2
      %s405 = sadd.s32 %s403, %s404
      %s406 = smul.addr %s405, 2
      %s407 = scalar_lea.vmem %s8, %s406
      %p408 = scmp.lt.s32.totalorder %s25, 1
      %s409 = scalar_select %p408, %s25, 1
      %p410 = scmp.lt.s32.totalorder %s26, 1
      %s411 = scalar_select %p410, %s26, 1
      %s412 = smul.addr %s409, 2
      %s413 = sadd.s32 %s411, %s412
      %s414 = smul.addr %s413, 2
      %s415 = scalar_lea.vmem %s9, %s414
      %v416 = vld [vmem:[%s391] sm:$0xf]
      %v417 = vld [vmem:[%s399] sm:$0xf]
      %v418 = vld [vmem:[%s2] sm:$0xf]
      %420 = vset.pattern.permute.xlu0 0
      %421 = vperm.xlu0 %420, %v418
      %v422 = vpop.permute.xlu0 %421
      %v424 = vperm.slane %v416, 0
      %v425 = vmul.f32 %v422, %v424
      %426 = vset.pattern.permute.xlu0 1
      %427 = vperm.xlu0 %426, %v418
      %v428 = vpop.permute.xlu0 %427
      %v430 = vperm.slane %v416, 1
      %v431 = vmul.f32 %v428, %v430
      %v432 = vadd.f32 %v425, %v431
      %433 = vset.pattern.permute.xlu0 2
      %434 = vperm.xlu0 %433, %v418
      %v435 = vpop.permute.xlu0 %434
      %v437 = vperm.slane %v416, 2
      %v438 = vmul.f32 %v435, %v437
      %v439 = vadd.f32 %v432, %v438
      %440 = vset.pattern.permute.xlu0 3
      %441 = vperm.xlu0 %440, %v418
      %v442 = vpop.permute.xlu0 %441
      %v444 = vperm.slane %v416, 3
      %v445 = vmul.f32 %v442, %v444
      %v446 = vadd.f32 %v439, %v445
      %v447 = vld [vmem:[%s3] sm:$0xf]
      %449 = vset.pattern.permute.xlu0 0
      %450 = vperm.xlu0 %449, %v447
      %v451 = vpop.permute.xlu0 %450
      %v453 = vperm.slane %v417, 0
      %v454 = vmul.f32 %v451, %v453
      %455 = vset.pattern.permute.xlu0 1
      %456 = vperm.xlu0 %455, %v447
      %v457 = vpop.permute.xlu0 %456
      %v459 = vperm.slane %v417, 1
      %v460 = vmul.f32 %v457, %v459
      %v461 = vadd.f32 %v454, %v460
      %462 = vset.pattern.permute.xlu0 2
      %463 = vperm.xlu0 %462, %v447
      %v464 = vpop.permute.xlu0 %463
      %v466 = vperm.slane %v417, 2
      %v467 = vmul.f32 %v464, %v466
      %v468 = vadd.f32 %v461, %v467
      %469 = vset.pattern.permute.xlu0 3
      %470 = vperm.xlu0 %469, %v447
      %v471 = vpop.permute.xlu0 %470
      %v473 = vperm.slane %v417, 3
      %v474 = vmul.f32 %v471, %v473
      %v475 = vadd.f32 %v468, %v474
      %v476 = vadd.f32 %v446, %v475
      %v477 = vld [vmem:[%s6] sm:$0xf]
      %479 = vset.pattern.permute.xlu0 0
      %480 = vperm.xlu0 %479, %v477
      %v481 = vpop.permute.xlu0 %480
      %v483 = vadd.f32 %v476, %v481
      %v484 = vld [vmem:[%s4] sm:$0xf]
      %486 = vset.pattern.permute.xlu0 0
      %487 = vperm.xlu0 %486, %v484
      %v488 = vpop.permute.xlu0 %487
      %v490 = vmul.f32 %v488, %v424
      %491 = vset.pattern.permute.xlu0 1
      %492 = vperm.xlu0 %491, %v484
      %v493 = vpop.permute.xlu0 %492
      %v495 = vmul.f32 %v493, %v430
      %v496 = vadd.f32 %v490, %v495
      %497 = vset.pattern.permute.xlu0 2
      %498 = vperm.xlu0 %497, %v484
      %v499 = vpop.permute.xlu0 %498
      %v501 = vmul.f32 %v499, %v437
      %v502 = vadd.f32 %v496, %v501
      %503 = vset.pattern.permute.xlu0 3
      %504 = vperm.xlu0 %503, %v484
      %v505 = vpop.permute.xlu0 %504
      %v507 = vmul.f32 %v505, %v444
      %v508 = vadd.f32 %v502, %v507
      %v509 = vld [vmem:[%s5] sm:$0xf]
      %511 = vset.pattern.permute.xlu0 0
      %512 = vperm.xlu0 %511, %v509
      %v513 = vpop.permute.xlu0 %512
      %v515 = vmul.f32 %v513, %v453
      %516 = vset.pattern.permute.xlu0 1
      %517 = vperm.xlu0 %516, %v509
      %v518 = vpop.permute.xlu0 %517
      %v520 = vmul.f32 %v518, %v459
      %v521 = vadd.f32 %v515, %v520
      %522 = vset.pattern.permute.xlu0 2
      %523 = vperm.xlu0 %522, %v509
      %v524 = vpop.permute.xlu0 %523
      %v526 = vmul.f32 %v524, %v466
      %v527 = vadd.f32 %v521, %v526
      %528 = vset.pattern.permute.xlu0 3
      %529 = vperm.xlu0 %528, %v509
      %v530 = vpop.permute.xlu0 %529
      %v532 = vmul.f32 %v530, %v473
      %v533 = vadd.f32 %v527, %v532
      %v534 = vadd.f32 %v508, %v533
      %v535 = vld [vmem:[%s7] sm:$0xf]
      %537 = vset.pattern.permute.xlu0 0
      %538 = vperm.xlu0 %537, %v535
      %v539 = vpop.permute.xlu0 %538
      %v541 = vadd.f32 %v534, %v539
      %v542 = vxor.u32 %v483, 2147483648
      %v543 = vmul.f32 %v542, 1.442695
      %v544 = vpow.pop %v543
      %v545 = vadd.f32 %v544, 1.0
      %v546 = vrcp.pop %v545
      %v547 = vmul.f32 %v545, %v546
      %v548 = vsub.f32 1.0, %v547
      %v549 = vmul.f32 %v546, %v548
      %v550 = vadd.f32 %v546, %v549
      %vm551 = vweird.f32 %v545
      %vm552 = vweird.f32 %v546
      %vm553 = vmor %vm551, %vm552
      %v554 = vsel %vm553, %v546, %v550
      %v555 = vand.u32 2147483647, %v545
      %vm556 = vcmp.eq.f32.partialorder %v555, 8.507059e+37
      %v557 = vand.u32 %v545, 2147483648
      %v558 = vor.u32 1.1754944e-38, %v557
      %v559 = vsel %vm556, %v558, %v554
      %v560 = vmul.f32 1.0, %v559
      %v561 = vmul.f32 %v483, %v560
      %v562 = vxor.u32 %v541, 2147483648
      %v563 = vmul.f32 %v562, 1.442695
      %v564 = vpow.pop %v563
      %v565 = vadd.f32 %v564, 1.0
      %v566 = vrcp.pop %v565
      %v567 = vmul.f32 %v565, %v566
      %v568 = vsub.f32 1.0, %v567
      %v569 = vmul.f32 %v566, %v568
      %v570 = vadd.f32 %v566, %v569
      %vm571 = vweird.f32 %v565
      %vm572 = vweird.f32 %v566
      %vm573 = vmor %vm571, %vm572
      %v574 = vsel %vm573, %v566, %v570
      %v575 = vand.u32 2147483647, %v565
      %vm576 = vcmp.eq.f32.partialorder %v575, 8.507059e+37
      %v577 = vand.u32 %v565, 2147483648
      %v578 = vor.u32 1.1754944e-38, %v577
      %v579 = vsel %vm576, %v578, %v574
      %v580 = vmul.f32 1.0, %v579
      %v581 = vmul.f32 %v541, %v580
      %v582 = vpack.c.bf16 %v561, %v561
      %583 = vst [vmem:[%s407] sm:$0x3] %v582
      %v584 = vpack.c.bf16 %v581, %v581
      %585 = vst [vmem:[%s415] sm:$0x3] %v584
      %p586 = scmp.lt.s32.totalorder %s25, 1
      %s587 = scalar_select %p586, %s25, 1
      %p588 = scmp.lt.s32.totalorder %s26, 1
      %s589 = scalar_select %p588, %s26, 1
      %s590 = smul.addr %s587, 2
      %s591 = sadd.s32 %s589, %s590
      %s592 = smul.addr %s591, 2
      %s593 = scalar_lea.vmem %s8, %s592
      %p594 = scmp.lt.s32.totalorder %s25, 1
      %s595 = scalar_select %p594, %s25, 1
      %p596 = scmp.lt.s32.totalorder %s26, 1
      %s597 = scalar_select %p596, %s26, 1
      %s598 = smul.addr %s595, 2
      %s599 = sadd.s32 %s597, %s598
      %s600 = smul.addr %s599, 2
      %s601 = scalar_lea.vmem %s9, %s600
      // Predicated region
      $region53: #{spectral_mamba_forward.4} parent=51 // pred_check
        %p602 = pneg %p235
      $region54: #{spectral_mamba_forward.4} parent=51 // pred_check_branch
        %604 = sbr.rel (%p602) target = $region56
      $region55: #{spectral_mamba_forward.4} parent=51 // pred_region
        _
      $region56: #{spectral_mamba_forward.4} parent=51 // pred_fallthru
        _
      // Predicated region
      $region57: #{spectral_mamba_forward.4} parent=51 // pred_check
        %p605 = pneg %p263
      $region58: #{spectral_mamba_forward.4} parent=51 // pred_check_branch
        %607 = sbr.rel (%p605) target = $region60
      $region59: #{spectral_mamba_forward.4} parent=51 // pred_region
        _
      $region60: #{spectral_mamba_forward.4} parent=51 // pred_fallthru
        _
    $region52: #{spectral_mamba_forward.4} parent=5 // pred_fallthru
      _
    %p608 = scmp.le.s32.totalorder 2, %s16
    // Predicated region
    $region61: #{spectral_mamba_forward.4} parent=5 // pred_check
      %p609 = pneg %p608
    $region62: #{spectral_mamba_forward.4} parent=5 // pred_check_branch
      %611 = sbr.rel (%p609) target = $region64
    $region63: #{spectral_mamba_forward.4} parent=5 // pred_region
      %s612 = ssub.s32 %s16, 2
      // Predicated region
      $region65: #{spectral_mamba_forward.4} parent=63 // pred_check
        %p613 = pneg %p241
      $region66: #{spectral_mamba_forward.4} parent=63 // pred_check_branch
        %615 = sbr.rel (%p613) target = $region68
      $region67: #{spectral_mamba_forward.4} parent=63 // pred_region
        %p616 = scmp.lt.s32.totalorder %s27, 1
        %s617 = scalar_select %p616, %s27, 1
        %p618 = scmp.lt.s32.totalorder %s28, 1
        %s619 = scalar_select %p618, %s28, 1
        %s620 = smul.addr %s617, 2
        %s621 = sadd.s32 %s619, %s620
        %s622 = smul.addr %s621, 2
        %s623 = scalar_lea.vmem %s8, %s622
      $region68: #{spectral_mamba_forward.4} parent=63 // pred_fallthru
        _
      // Predicated region
      $region69: #{spectral_mamba_forward.4} parent=63 // pred_check
        %p624 = pneg %p269
      $region70: #{spectral_mamba_forward.4} parent=63 // pred_check_branch
        %626 = sbr.rel (%p624) target = $region72
      $region71: #{spectral_mamba_forward.4} parent=63 // pred_region
        %p627 = scmp.lt.s32.totalorder %s27, 1
        %s628 = scalar_select %p627, %s27, 1
        %p629 = scmp.lt.s32.totalorder %s28, 1
        %s630 = scalar_select %p629, %s28, 1
        %s631 = smul.addr %s628, 2
        %s632 = sadd.s32 %s630, %s631
        %s633 = smul.addr %s632, 2
        %s634 = scalar_lea.vmem %s9, %s633
      $region72: #{spectral_mamba_forward.4} parent=63 // pred_fallthru
        _
    $region64: #{spectral_mamba_forward.4} parent=5 // pred_fallthru
      _
  $region6: #{spectral_mamba_forward.4} parent=0 // loop_footer
    %s20 = sadd.s32 1, %s16
  $region7: #{spectral_mamba_forward.4} parent=0 // loop_footer_branch
    %15 = sbr.rel target = $region3
  $region8: #{spectral_mamba_forward.4} parent=0 // loop_exit
    _

// kernel: spectral_mamba_forward.5
$region0: #{spectral_mamba_forward.5}
  #allocation0 [shape = 'u32[]', space=smem, size = 0x4, offset = 0x4, fixed_abs, tag = 'smem constant byte address 0x4 - core index']
  #allocation1 [shape = 'u32[72,128]{1,0:T(1,128)}', space=vmem, size = 0x9000, scoped, tag = 'internal scratch']
  %s0 = inlined_call_operand.vmem [shape: f32[2,4,256], index: 0, kind: input, shape index: {}]
  %s1 = inlined_call_operand.vmem [shape: f32[4,4], index: 1, kind: input, shape index: {}]
  %s2 = inlined_call_operand.vmem [shape: f32[4,1], index: 2, kind: input, shape index: {}]
  %s3 = inlined_call_operand.vmem [shape: f32[2,4,256], index: 3, kind: input, shape index: {}]
  %s4 = inlined_call_operand.vmem [shape: f32[4,1], index: 4, kind: input, shape index: {}]
  %s5 = inlined_call_operand.vmem [shape: f32[4,1], index: 5, kind: input, shape index: {}]
  %s6 = inlined_call_operand.vmem [shape: f32[2,4,256], index: 6, kind: output, shape index: {}]
  %s7 = sld [smem:[#allocation0]]
  $region57: #{spectral_mamba_forward.5} parent=0
    _
  %s9 = ssub.s32 1, %s7
  %s10 = scalar_select 0, %s9, %s7
  loop: start=0, step=1, limit=6
  $region2: #{spectral_mamba_forward.5} parent=0 // loop_pre_header
    _
  $region3: #{spectral_mamba_forward.5} parent=0 // loop_header
    %s12 = sphi 0, %s16
    %p13 = scmp.ge.s32.totalorder %s12, 6
    %s19 = sphi 0, %s31
    %s20 = sphi 0, %s27
    %s21 = sphi 0, %s19
    %s22 = sphi 0, %s20
    %s23 = sphi 0, %s21
    %s24 = sphi 0, %s22
    %s36 = sphi 0, %s38
    %s39 = sphi 0, %s36
    %s40 = sphi 0, %s39
    %s56 = sphi 0, %s40
    %s60 = sphi 0, %s60
    %s62 = sphi 0, %s60
    %s63 = sphi 0, %s62
    %s77 = sphi 0, %s63
    %s81 = sphi 0, %s81
    %s83 = sphi 0, %s81
    %s84 = sphi 0, %s83
    %s98 = sphi 0, %s84
    %s106 = sphi 0, %s108
    %s109 = sphi 0, %s106
    %s110 = sphi 0, %s109
    %s126 = sphi 0, %s110
    %s130 = sphi 0, %s130
    %s132 = sphi 0, %s130
    %s133 = sphi 0, %s132
    %s147 = sphi 0, %s133
    %s151 = sphi 0, %s151
    %s153 = sphi 0, %s151
    %s154 = sphi 0, %s153
    %s168 = sphi 0, %s154
    %s176 = sphi 0, %s178
    %s179 = sphi 0, %s176
    %s180 = sphi 0, %s179
    %s196 = sphi 0, %s180
  $region4: #{spectral_mamba_forward.5} parent=0 // loop_header_branch
    %15 = sbr.rel (%p13) target = $region8
  $region5: #{spectral_mamba_forward.5} parent=0 // loop_body
    %s17 = ssub.s32 %s12, 1
    %s18 = ssub.s32 %s12, 2
    %s25 = sadd.s32 1, %s20
    %p26 = scmp.ge.s32.totalorder %s25, 2
    %s27 = scalar_select %p26, 0, %s25
    %s28 = sadd.s32 1, %s19
    %s29 = scalar_select %p26, %s28, %s19
    %p30 = scmp.ge.s32.totalorder %s29, 2
    %s31 = scalar_select %p30, 0, %s29
    %s32 = ssub.s32 %s19, %s31
    %s33 = ssub.s32 %s20, %s27
    %s34 = sor.u32 %s32, %s33
    %p35 = scmp.eq.s32.totalorder %s34, 0
    %s37 = sadd.s32 %s36, 1
    %s38 = scalar_select %p35, %s36, %s37
    %p41 = pneg %p35
    %p42 = scmp.eq.s32.totalorder %s12, 3
    %p43 = por %p41, %p42
    %p44 = scmp.ne.s32.totalorder %s36, %s39
    %p45 = scmp.eq.s32.totalorder %s12, 0
    %p46 = por %p44, %p45
    %p47 = scmp.ne.s32.totalorder %s36, %s39
    %p48 = scmp.eq.s32.totalorder %s17, 3
    %p49 = por %p47, %p48
    %p50 = scmp.ne.s32.totalorder %s39, %s40
    %p51 = scmp.eq.s32.totalorder %s17, 0
    %p52 = por %p50, %p51
    %p53 = scmp.ne.s32.totalorder %s39, %s40
    %p54 = scmp.eq.s32.totalorder %s18, 3
    %p55 = por %p53, %p54
    %p57 = scmp.ne.s32.totalorder %s40, %s56
    %p58 = scmp.eq.s32.totalorder %s18, 0
    %p59 = por %p57, %p58
    %s61 = sadd.s32 %s60, 1
    %p64 = scmp.eq.s32.totalorder %s12, 3
    %p65 = scmp.ne.s32.totalorder %s60, %s62
    %p66 = scmp.eq.s32.totalorder %s12, 0
    %p67 = por %p65, %p66
    %p68 = scmp.ne.s32.totalorder %s60, %s62
    %p69 = scmp.eq.s32.totalorder %s17, 3
    %p70 = por %p68, %p69
    %p71 = scmp.ne.s32.totalorder %s62, %s63
    %p72 = scmp.eq.s32.totalorder %s17, 0
    %p73 = por %p71, %p72
    %p74 = scmp.ne.s32.totalorder %s62, %s63
    %p75 = scmp.eq.s32.totalorder %s18, 3
    %p76 = por %p74, %p75
    %p78 = scmp.ne.s32.totalorder %s63, %s77
    %p79 = scmp.eq.s32.totalorder %s18, 0
    %p80 = por %p78, %p79
    %s82 = sadd.s32 %s81, 1
    %p85 = scmp.eq.s32.totalorder %s12, 3
    %p86 = scmp.ne.s32.totalorder %s81, %s83
    %p87 = scmp.eq.s32.totalorder %s12, 0
    %p88 = por %p86, %p87
    %p89 = scmp.ne.s32.totalorder %s81, %s83
    %p90 = scmp.eq.s32.totalorder %s17, 3
    %p91 = por %p89, %p90
    %p92 = scmp.ne.s32.totalorder %s83, %s84
    %p93 = scmp.eq.s32.totalorder %s17, 0
    %p94 = por %p92, %p93
    %p95 = scmp.ne.s32.totalorder %s83, %s84
    %p96 = scmp.eq.s32.totalorder %s18, 3
    %p97 = por %p95, %p96
    %p99 = scmp.ne.s32.totalorder %s84, %s98
    %p100 = scmp.eq.s32.totalorder %s18, 0
    %p101 = por %p99, %p100
    %s102 = ssub.s32 %s19, %s31
    %s103 = ssub.s32 %s20, %s27
    %s104 = sor.u32 %s102, %s103
    %p105 = scmp.eq.s32.totalorder %s104, 0
    %s107 = sadd.s32 %s106, 1
    %s108 = scalar_select %p105, %s106, %s107
    %p111 = pneg %p105
    %p112 = scmp.eq.s32.totalorder %s12, 3
    %p113 = por %p111, %p112
    %p114 = scmp.ne.s32.totalorder %s106, %s109
    %p115 = scmp.eq.s32.totalorder %s12, 0
    %p116 = por %p114, %p115
    %p117 = scmp.ne.s32.totalorder %s106, %s109
    %p118 = scmp.eq.s32.totalorder %s17, 3
    %p119 = por %p117, %p118
    %p120 = scmp.ne.s32.totalorder %s109, %s110
    %p121 = scmp.eq.s32.totalorder %s17, 0
    %p122 = por %p120, %p121
    %p123 = scmp.ne.s32.totalorder %s109, %s110
    %p124 = scmp.eq.s32.totalorder %s18, 3
    %p125 = por %p123, %p124
    %p127 = scmp.ne.s32.totalorder %s110, %s126
    %p128 = scmp.eq.s32.totalorder %s18, 0
    %p129 = por %p127, %p128
    %s131 = sadd.s32 %s130, 1
    %p134 = scmp.eq.s32.totalorder %s12, 3
    %p135 = scmp.ne.s32.totalorder %s130, %s132
    %p136 = scmp.eq.s32.totalorder %s12, 0
    %p137 = por %p135, %p136
    %p138 = scmp.ne.s32.totalorder %s130, %s132
    %p139 = scmp.eq.s32.totalorder %s17, 3
    %p140 = por %p138, %p139
    %p141 = scmp.ne.s32.totalorder %s132, %s133
    %p142 = scmp.eq.s32.totalorder %s17, 0
    %p143 = por %p141, %p142
    %p144 = scmp.ne.s32.totalorder %s132, %s133
    %p145 = scmp.eq.s32.totalorder %s18, 3
    %p146 = por %p144, %p145
    %p148 = scmp.ne.s32.totalorder %s133, %s147
    %p149 = scmp.eq.s32.totalorder %s18, 0
    %p150 = por %p148, %p149
    %s152 = sadd.s32 %s151, 1
    %p155 = scmp.eq.s32.totalorder %s12, 3
    %p156 = scmp.ne.s32.totalorder %s151, %s153
    %p157 = scmp.eq.s32.totalorder %s12, 0
    %p158 = por %p156, %p157
    %p159 = scmp.ne.s32.totalorder %s151, %s153
    %p160 = scmp.eq.s32.totalorder %s17, 3
    %p161 = por %p159, %p160
    %p162 = scmp.ne.s32.totalorder %s153, %s154
    %p163 = scmp.eq.s32.totalorder %s17, 0
    %p164 = por %p162, %p163
    %p165 = scmp.ne.s32.totalorder %s153, %s154
    %p166 = scmp.eq.s32.totalorder %s18, 3
    %p167 = por %p165, %p166
    %p169 = scmp.ne.s32.totalorder %s154, %s168
    %p170 = scmp.eq.s32.totalorder %s18, 0
    %p171 = por %p169, %p170
    %s172 = ssub.s32 %s19, %s31
    %s173 = ssub.s32 %s20, %s27
    %s174 = sor.u32 %s172, %s173
    %p175 = scmp.eq.s32.totalorder %s174, 0
    %s177 = sadd.s32 %s176, 1
    %s178 = scalar_select %p175, %s176, %s177
    %p181 = pneg %p175
    %p182 = scmp.eq.s32.totalorder %s12, 3
    %p183 = por %p181, %p182
    %p184 = scmp.ne.s32.totalorder %s176, %s179
    %p185 = scmp.eq.s32.totalorder %s12, 0
    %p186 = por %p184, %p185
    %p187 = scmp.ne.s32.totalorder %s176, %s179
    %p188 = scmp.eq.s32.totalorder %s17, 3
    %p189 = por %p187, %p188
    %p190 = scmp.ne.s32.totalorder %s179, %s180
    %p191 = scmp.eq.s32.totalorder %s17, 0
    %p192 = por %p190, %p191
    %p193 = scmp.ne.s32.totalorder %s179, %s180
    %p194 = scmp.eq.s32.totalorder %s18, 3
    %p195 = por %p193, %p194
    %p197 = scmp.ne.s32.totalorder %s180, %s196
    %p198 = scmp.eq.s32.totalorder %s18, 0
    %p199 = por %p197, %p198
    %p200 = scmp.le.s32.totalorder 1, %s12
    %p201 = scmp.lt.s32.totalorder %s12, 5
    %p202 = pnand %p200, %p201
    %p203 = pneg %p202
    // Predicated region
    $region9: #{spectral_mamba_forward.5} parent=5 // pred_check
      _
    $region10: #{spectral_mamba_forward.5} parent=5 // pred_check_branch
      %205 = sbr.rel (%p202) target = $region12
    $region11: #{spectral_mamba_forward.5} parent=5 // pred_region
      %s206 = ssub.s32 %s12, 1
      // Predicated region
      $region13: #{spectral_mamba_forward.5} parent=11 // pred_check
        %p207 = pneg %p73
      $region14: #{spectral_mamba_forward.5} parent=11 // pred_check_branch
        %209 = sbr.rel (%p207) target = $region16
      $region15: #{spectral_mamba_forward.5} parent=11 // pred_region
        _
      $region16: #{spectral_mamba_forward.5} parent=11 // pred_fallthru
        _
      // Predicated region
      $region17: #{spectral_mamba_forward.5} parent=11 // pred_check
        %p210 = pneg %p94
      $region18: #{spectral_mamba_forward.5} parent=11 // pred_check_branch
        %212 = sbr.rel (%p210) target = $region20
      $region19: #{spectral_mamba_forward.5} parent=11 // pred_region
        _
      $region20: #{spectral_mamba_forward.5} parent=11 // pred_fallthru
        _
      // Predicated region
      $region21: #{spectral_mamba_forward.5} parent=11 // pred_check
        %p213 = pneg %p143
      $region22: #{spectral_mamba_forward.5} parent=11 // pred_check_branch
        %215 = sbr.rel (%p213) target = $region24
      $region23: #{spectral_mamba_forward.5} parent=11 // pred_region
        _
      $region24: #{spectral_mamba_forward.5} parent=11 // pred_fallthru
        _
      // Predicated region
      $region25: #{spectral_mamba_forward.5} parent=11 // pred_check
        %p216 = pneg %p164
      $region26: #{spectral_mamba_forward.5} parent=11 // pred_check_branch
        %218 = sbr.rel (%p216) target = $region28
      $region27: #{spectral_mamba_forward.5} parent=11 // pred_region
        _
      $region28: #{spectral_mamba_forward.5} parent=11 // pred_fallthru
        _
    $region12: #{spectral_mamba_forward.5} parent=5 // pred_fallthru
      _
    %p219 = scmp.lt.s32.totalorder %s12, 4
    // Predicated region
    $region29: #{spectral_mamba_forward.5} parent=5 // pred_check
      %p220 = pneg %p219
    $region30: #{spectral_mamba_forward.5} parent=5 // pred_check_branch
      %222 = sbr.rel (%p220) target = $region32
    $region31: #{spectral_mamba_forward.5} parent=5 // pred_region
      // Predicated region
      $region33: #{spectral_mamba_forward.5} parent=31 // pred_check
        %p223 = pneg %p46
      $region34: #{spectral_mamba_forward.5} parent=31 // pred_check_branch
        %225 = sbr.rel (%p223) target = $region36
      $region35: #{spectral_mamba_forward.5} parent=31 // pred_region
        %p226 = scmp.lt.s32.totalorder %s19, 1
        %s227 = scalar_select %p226, %s19, 1
        %p228 = scmp.lt.s32.totalorder %s20, 1
        %s229 = scalar_select %p228, %s20, 1
        %s230 = smul.addr %s227, 2
        %s231 = sadd.s32 %s229, %s230
        %s232 = smul.addr %s231, 4
        %s233 = scalar_lea.vmem %s0, %s232
      $region36: #{spectral_mamba_forward.5} parent=31 // pred_fallthru
        _
      // Predicated region
      $region37: #{spectral_mamba_forward.5} parent=31 // pred_check
        %p234 = pneg %p116
      $region38: #{spectral_mamba_forward.5} parent=31 // pred_check_branch
        %236 = sbr.rel (%p234) target = $region40
      $region39: #{spectral_mamba_forward.5} parent=31 // pred_region
        %p237 = scmp.lt.s32.totalorder %s19, 1
        %s238 = scalar_select %p237, %s19, 1
        %p239 = scmp.lt.s32.totalorder %s20, 1
        %s240 = scalar_select %p239, %s20, 1
        %s241 = smul.addr %s238, 2
        %s242 = sadd.s32 %s240, %s241
        %s243 = smul.addr %s242, 4
        %s244 = scalar_lea.vmem %s3, %s243
      $region40: #{spectral_mamba_forward.5} parent=31 // pred_fallthru
        _
    $region32: #{spectral_mamba_forward.5} parent=5 // pred_fallthru
      _
    %p245 = scmp.le.s32.totalorder 1, %s12
    %p246 = scmp.lt.s32.totalorder %s12, 5
    %p247 = pnand %p245, %p246
    %p248 = pneg %p247
    // Predicated region
    $region41: #{spectral_mamba_forward.5} parent=5 // pred_check
      _
    $region42: #{spectral_mamba_forward.5} parent=5 // pred_check_branch
      %250 = sbr.rel (%p247) target = $region44
    $region43: #{spectral_mamba_forward.5} parent=5 // pred_region
      %s251 = ssub.s32 %s12, 1
      %p252 = scmp.lt.s32.totalorder %s21, 1
      %s253 = scalar_select %p252, %s21, 1
      %p254 = scmp.lt.s32.totalorder %s22, 1
      %s255 = scalar_select %p254, %s22, 1
      %s256 = smul.addr %s253, 2
      %s257 = sadd.s32 %s255, %s256
      %s258 = smul.addr %s257, 4
      %s259 = scalar_lea.vmem %s0, %s258
      %p260 = pneg %p52
      %p261 = pneg %p49
      %p262 = pneg %p73
      %p263 = pneg %p70
      %p264 = pneg %p94
      %p265 = pneg %p91
      %p266 = scmp.lt.s32.totalorder %s21, 1
      %s267 = scalar_select %p266, %s21, 1
      %p268 = scmp.lt.s32.totalorder %s22, 1
      %s269 = scalar_select %p268, %s22, 1
      %s270 = smul.addr %s267, 2
      %s271 = sadd.s32 %s269, %s270
      %s272 = smul.addr %s271, 4
      %s273 = scalar_lea.vmem %s3, %s272
      %p274 = pneg %p122
      %p275 = pneg %p119
      %p276 = pneg %p143
      %p277 = pneg %p140
      %p278 = pneg %p164
      %p279 = pneg %p161
      %p280 = pneg %p192
      %p281 = pneg %p189
      %p282 = scmp.lt.s32.totalorder %s21, 1
      %s283 = scalar_select %p282, %s21, 1
      %p284 = scmp.lt.s32.totalorder %s22, 1
      %s285 = scalar_select %p284, %s22, 1
      %s286 = smul.addr %s283, 2
      %s287 = sadd.s32 %s285, %s286
      %s288 = smul.addr %s287, 4
      %s289 = scalar_lea.vmem %s6, %s288
      %p290 = scmp.lt.s32.totalorder %s21, 1
      %s291 = scalar_select %p290, %s21, 1
      %p292 = scmp.lt.s32.totalorder %s22, 1
      %s293 = scalar_select %p292, %s22, 1
      %s294 = smul.addr %s291, 2
      %s295 = sadd.s32 %s293, %s294
      %s296 = smul.addr %s295, 4
      %s297 = scalar_lea.vmem %s0, %s296
      %p298 = scmp.lt.s32.totalorder %s21, 1
      %s299 = scalar_select %p298, %s21, 1
      %p300 = scmp.lt.s32.totalorder %s22, 1
      %s301 = scalar_select %p300, %s22, 1
      %s302 = smul.addr %s299, 2
      %s303 = sadd.s32 %s301, %s302
      %s304 = smul.addr %s303, 4
      %s305 = scalar_lea.vmem %s3, %s304
      %p306 = scmp.lt.s32.totalorder %s21, 1
      %s307 = scalar_select %p306, %s21, 1
      %p308 = scmp.lt.s32.totalorder %s22, 1
      %s309 = scalar_select %p308, %s22, 1
      %s310 = smul.addr %s307, 2
      %s311 = sadd.s32 %s309, %s310
      %s312 = smul.addr %s311, 4
      %s313 = scalar_lea.vmem %s6, %s312
      %v314 = vld [vmem:[%s305] sm:$0xf]
      %v315 = vld [vmem:[%s4] sm:$0xf]
      %v316 = vld [vmem:[%s5] sm:$0xf]
      %vm317 = vcmask 1043456
      %v318 = vsel %vm317, %v314, 0.0
      %v319 = vrot.slane %v318, 4
      %v320 = vadd.f32 %v318, %v319
      %v321 = vrot.slane %v320, 2
      %v322 = vadd.f32 %v320, %v321
      %v323 = vrot.slane %v322, 1
      %v324 = vadd.f32 %v322, %v323
      %v325 = vrcp.pop 4.0
      %v326 = vmul.f32 4.0, %v325
      %v327 = vsub.f32 1.0, %v326
      %v328 = vmul.f32 %v325, %v327
      %v329 = vadd.f32 %v325, %v328
      %vm330 = vweird.f32 %v325
      %v331 = vsel %vm330, %v325, %v329
      %v332 = vmul.f32 %v324, %v331
      %v333 = vsub.f32 %v314, %v332
      %v334 = vmul.f32 %v333, %v333
      %v335 = vsel %vm317, %v334, 0.0
      %v336 = vrot.slane %v335, 4
      %v337 = vadd.f32 %v335, %v336
      %v338 = vrot.slane %v337, 2
      %v339 = vadd.f32 %v337, %v338
      %v340 = vrot.slane %v339, 1
      %v341 = vadd.f32 %v339, %v340
      %v342 = vmul.f32 %v341, %v331
      %v343 = vadd.f32 %v342, 1e-05
      %v344 = vrsqrt.pop %v343
      %v345 = vmul.f32 %v344, %v343
      %v346 = vmul.f32 %v345, %v344
      %v347 = vmul.f32 0.5, %v346
      %v348 = vsub.f32 1.5, %v347
      %v349 = vmul.f32 %v344, %v348
      %vm350 = vweird.f32 %v343
      %vm351 = vweird.f32 %v344
      %vm352 = vmor %vm350, %vm351
      %v353 = vsel %vm352, %v344, %v349
      %v354 = vmul.f32 %v333, %v353
      %356 = vset.pattern.permute.xlu0 0
      %357 = vperm.xlu0 %356, %v315
      %v358 = vpop.permute.xlu0 %357
      %v360 = vmul.f32 %v354, %v358
      %362 = vset.pattern.permute.xlu0 0
      %363 = vperm.xlu0 %362, %v316
      %v364 = vpop.permute.xlu0 %363
      %v366 = vadd.f32 %v360, %v364
      %v367 = vld [vmem:[%s297] sm:$0xf]
      %v368 = vld [vmem:[%s1] sm:$0xf]
      %370 = vset.pattern.permute.xlu0 0
      %371 = vperm.xlu0 %370, %v368
      %v372 = vpop.permute.xlu0 %371
      %v374 = vperm.slane %v367, 0
      %v375 = vmul.f32 %v372, %v374
      %376 = vset.pattern.permute.xlu0 1
      %377 = vperm.xlu0 %376, %v368
      %v378 = vpop.permute.xlu0 %377
      %v380 = vperm.slane %v367, 1
      %v381 = vmul.f32 %v378, %v380
      %v382 = vadd.f32 %v375, %v381
      %383 = vset.pattern.permute.xlu0 2
      %384 = vperm.xlu0 %383, %v368
      %v385 = vpop.permute.xlu0 %384
      %v387 = vperm.slane %v367, 2
      %v388 = vmul.f32 %v385, %v387
      %v389 = vadd.f32 %v382, %v388
      %390 = vset.pattern.permute.xlu0 3
      %391 = vperm.xlu0 %390, %v368
      %v392 = vpop.permute.xlu0 %391
      %v394 = vperm.slane %v367, 3
      %v395 = vmul.f32 %v392, %v394
      %v396 = vadd.f32 %v389, %v395
      %v397 = vld [vmem:[%s2] sm:$0xf]
      %399 = vset.pattern.permute.xlu0 0
      %400 = vperm.xlu0 %399, %v397
      %v401 = vpop.permute.xlu0 %400
      %v403 = vadd.f32 %v396, %v401
      %v404 = vmul.f32 %v403, %v366
      %v405 = vadd.f32 %v404, %v314
      %406 = vst [vmem:[%s313] sm:$0xf] %v405
      %p407 = scmp.lt.s32.totalorder %s21, 1
      %s408 = scalar_select %p407, %s21, 1
      %p409 = scmp.lt.s32.totalorder %s22, 1
      %s410 = scalar_select %p409, %s22, 1
      %s411 = smul.addr %s408, 2
      %s412 = sadd.s32 %s410, %s411
      %s413 = smul.addr %s412, 4
      %s414 = scalar_lea.vmem %s6, %s413
      // Predicated region
      $region45: #{spectral_mamba_forward.5} parent=43 // pred_check
        %p415 = pneg %p189
      $region46: #{spectral_mamba_forward.5} parent=43 // pred_check_branch
        %417 = sbr.rel (%p415) target = $region48
      $region47: #{spectral_mamba_forward.5} parent=43 // pred_region
        _
      $region48: #{spectral_mamba_forward.5} parent=43 // pred_fallthru
        _
    $region44: #{spectral_mamba_forward.5} parent=5 // pred_fallthru
      _
    %p418 = scmp.le.s32.totalorder 2, %s12
    // Predicated region
    $region49: #{spectral_mamba_forward.5} parent=5 // pred_check
      %p419 = pneg %p418
    $region50: #{spectral_mamba_forward.5} parent=5 // pred_check_branch
      %421 = sbr.rel (%p419) target = $region52
    $region51: #{spectral_mamba_forward.5} parent=5 // pred_region
      %s422 = ssub.s32 %s12, 2
      // Predicated region
      $region53: #{spectral_mamba_forward.5} parent=51 // pred_check
        %p423 = pneg %p195
      $region54: #{spectral_mamba_forward.5} parent=51 // pred_check_branch
        %425 = sbr.rel (%p423) target = $region56
      $region55: #{spectral_mamba_forward.5} parent=51 // pred_region
        %p426 = scmp.lt.s32.totalorder %s23, 1
        %s427 = scalar_select %p426, %s23, 1
        %p428 = scmp.lt.s32.totalorder %s24, 1
        %s429 = scalar_select %p428, %s24, 1
        %s430 = smul.addr %s427, 2
        %s431 = sadd.s32 %s429, %s430
        %s432 = smul.addr %s431, 4
        %s433 = scalar_lea.vmem %s6, %s432
      $region56: #{spectral_mamba_forward.5} parent=51 // pred_fallthru
        _
    $region52: #{spectral_mamba_forward.5} parent=5 // pred_fallthru
      _
  $region6: #{spectral_mamba_forward.5} parent=0 // loop_footer
    %s16 = sadd.s32 1, %s12
  $region7: #{spectral_mamba_forward.5} parent=0 // loop_footer_branch
    %11 = sbr.rel target = $region3
  $region8: #{spectral_mamba_forward.5} parent=0 // loop_exit
    _

</llo_original>
